<compile_context>
chip_gen: v7x
topology: tpu7x:2x2x1
jax: 0.10.0
libtpu: 0.0.40
codegen_flags: <defaults>
</compile_context>

<pallas_src>
import jax
import jax.numpy as jnp
from jax.experimental import pallas as pl
from jax.experimental.pallas import tpu as pltpu


def _make_kernel(use_leaky: bool, leaky_slope: float = 0.01):
    def kernel(x_ref, w1_ref, b1_ref, w2_ref, b2_ref, o_ref):
        x = x_ref[0]  # (C, t_hw): channels on sublanes, spatial on lanes
        # conv1 (1x1) == matmul over channels (MXU); bias broadcasts along lanes
        h = jnp.dot(w1_ref[...], x, preferred_element_type=jnp.float32)
        h = h + b1_ref[...]                       # (hidden, t_hw) + (hidden, 1)
        if use_leaky:
            h = jnp.where(h > 0.0, h, leaky_slope * h)
        else:
            h = jnp.maximum(h, 0.0)
        # conv2 (1x1): hidden -> 1
        s = jnp.dot(w2_ref[...], h, preferred_element_type=jnp.float32)
        s = s + b2_ref[...]                       # (1, t_hw) + (1, 1)
        # Softplus(beta=1, threshold=20): x if x > 20 else log1p(exp(x))
        sp = jnp.where(s > 20.0, s, jnp.log1p(jnp.exp(jnp.minimum(s, 20.0))))
        o_ref[0] = sp.astype(o_ref.dtype)
    return kernel


def spatial_attention_2d(x, w1, b1, w2, b2, *, act_fn="relu",
                         vmem_budget_bytes=24 * 1024 * 1024):
    """Fused SpatialAttention2d forward.

    x  : (B, C, H, W)  spatial feature map (NCHW)
    w1 : (hidden, C), b1 : (hidden,)   -- conv1 1x1 weight/bias
    w2 : (1, hidden), b2 : (1,)        -- conv2 1x1 weight/bias
    returns (B, 1, H, W) softplus attention scores.
    """
    B, C, H, W = x.shape
    hidden = w1.shape[0]
    HW = H * W
    lane = 128

    # Free, contiguous reshape: spatial axis becomes the lane-dense last dim.
    x3 = x.reshape(B, C, HW)

    # Spatial tile: multiple of 128, sized from a VMEM budget
    # (double-buffered x tile + f32 hidden activation + output column).
    bytes_per_col = (2 * C + hidden + 2) * 4
    t_cap = (vmem_budget_bytes // bytes_per_col) // lane * lane
    t_cap = max(lane, min(t_cap, 4096))
    hw_aligned = ((HW + lane - 1) // lane) * lane
    t_hw = min(hw_aligned, t_cap)
    n_tiles = pl.cdiv(HW, t_hw)
    HW_pad = n_tiles * t_hw

    if HW_pad != HW:  # pad only when needed
        x3 = jnp.pad(x3, ((0, 0), (0, 0), (0, HW_pad - HW)))

    b1_2d = b1.reshape(hidden, 1)
    b2_2d = b2.reshape(1, 1)

    use_leaky = act_fn.lower() in ("leakyrelu", "leaky", "leaky_relu")
    kernel = _make_kernel(use_leaky)

    out3 = pl.pallas_call(
        kernel,
        out_shape=jax.ShapeDtypeStruct((B, 1, HW_pad), x.dtype),
        grid_spec=pltpu.PrefetchScalarGridSpec(
            num_scalar_prefetch=0,
            grid=(B, n_tiles),
            in_specs=[
                pl.BlockSpec((1, C, t_hw), lambda b, j: (b, 0, j)),  # x tile
                pl.BlockSpec((hidden, C), lambda b, j: (0, 0)),      # w1 (resident)
                pl.BlockSpec((hidden, 1), lambda b, j: (0, 0)),      # b1
                pl.BlockSpec((1, hidden), lambda b, j: (0, 0)),      # w2
                pl.BlockSpec((1, 1), lambda b, j: (0, 0)),           # b2
            ],
            out_specs=pl.BlockSpec((1, 1, t_hw), lambda b, j: (b, 0, j)),
        ),
        compiler_params=pltpu.CompilerParams(
            dimension_semantics=("parallel", "parallel"),
        ),
    )(x3, w1, b1_2d, w2, b2_2d)

    if HW_pad != HW:  # slice only when we actually padded
        out3 = out3[:, :, :HW]
    return out3.reshape(B, 1, H, W)


if __name__ == "__main__":
    key = jax.random.PRNGKey(0)
    kx, kw1, kb1, kw2, kb2 = jax.random.split(key, 5)

    B, C, H, W = 2, 4, 16, 16
    HIDDEN = 512  # fixed by the module: conv1 in_c->512, conv2 512->1

    x = jax.random.normal(kx, (B, C, H, W), dtype=jnp.float32)
    w1 = jax.random.normal(kw1, (HIDDEN, C), dtype=jnp.float32) * 0.1
    b1 = jax.random.normal(kb1, (HIDDEN,), dtype=jnp.float32) * 0.1
    w2 = jax.random.normal(kw2, (1, HIDDEN), dtype=jnp.float32) * 0.1
    b2 = jax.random.normal(kb2, (1,), dtype=jnp.float32) * 0.1

    out = spatial_attention_2d(x, w1, b1, w2, b2, act_fn="relu")
    jax.block_until_ready(out)

    # Pure-JAX reference (1x1 convs == per-pixel matmuls over channels).
    xf = x.reshape(B, C, H * W)
    h = jnp.einsum("oc,bcs->bos", w1, xf,
                   precision=jax.lax.Precision.HIGHEST) + b1[None, :, None]
    h = jnp.maximum(h, 0.0)
    s = jnp.einsum("oc,bcs->bos", w2, h,
                   precision=jax.lax.Precision.HIGHEST) + b2[None, :, None]
    ref = jnp.where(s > 20.0, s, jnp.log1p(jnp.exp(jnp.minimum(s, 20.0))))
    ref = ref.reshape(B, 1, H, W)

    assert out.shape == ref.shape
    assert jnp.allclose(out, ref, atol=1e-3, rtol=1e-3), float(
        jnp.max(jnp.abs(out - ref)))
    print("KERNEL_OK")
</pallas_src>

<mosaic_0001>
module attributes {stable_mosaic.version = 11 : i64} {
  func.func @kernel(%arg0: i32, %arg1: i32, %arg2: memref<1x4x256xf32, #tpu.memory_space<vmem>>, %arg3: memref<512x4xf32, #tpu.memory_space<vmem>>, %arg4: memref<512x1xf32, #tpu.memory_space<vmem>>, %arg5: memref<1x512xf32, #tpu.memory_space<vmem>>, %arg6: memref<1x1xf32, #tpu.memory_space<vmem>>, %arg7: memref<1x1x256xf32, #tpu.memory_space<vmem>>) attributes {dimension_semantics = [#tpu.dimension_semantics<parallel>, #tpu.dimension_semantics<parallel>], iteration_bounds = array<i64: 2, 1>, scalar_prefetch = 0 : i64, scratch_operands = 0 : i64, tpu.core_type = #tpu.core_type<tc>, window_params = [{transform_indices = @transform_0, window_bounds = array<i64: 1, 4, 256>}, {pipeline_mode = #tpu.pipeline_mode<synchronous>, transform_indices = @transform_1, window_bounds = array<i64: 512, 4>}, {pipeline_mode = #tpu.pipeline_mode<synchronous>, transform_indices = @transform_2, window_bounds = array<i64: 512, 1>}, {pipeline_mode = #tpu.pipeline_mode<synchronous>, transform_indices = @transform_3, window_bounds = array<i64: 1, 512>}, {pipeline_mode = #tpu.pipeline_mode<synchronous>, transform_indices = @transform_4, window_bounds = array<i64: 1, 1>}, {transform_indices = @transform_5, window_bounds = array<i64: 1, 1, 256>}]} {
    %c0 = arith.constant 0 : index
    %c0_0 = arith.constant 0 : index
    %c0_1 = arith.constant 0 : index
    %0 = vector.load %arg2[%c0, %c0_0, %c0_1] : memref<1x4x256xf32, #tpu.memory_space<vmem>>, vector<1x4x256xf32>
    %1 = vector.shape_cast %0 : vector<1x4x256xf32> to vector<4x256xf32>
    %c0_2 = arith.constant 0 : index
    %c0_3 = arith.constant 0 : index
    %2 = vector.load %arg3[%c0_2, %c0_3] : memref<512x4xf32, #tpu.memory_space<vmem>>, vector<512x4xf32>
    %cst = arith.constant dense<0.000000e+00> : vector<512x256xf32>
    %3 = tpu.matmul %2, %1, %cst {dimension_numbers = #tpu.dot_dimension_numbers<[1], [0], [0], [1], [0, 0, 1, 1], [], []>} : vector<512x4xf32>, vector<4x256xf32>, vector<512x256xf32> -> vector<512x256xf32>
    %c0_4 = arith.constant 0 : index
    %c0_5 = arith.constant 0 : index
    %4 = vector.load %arg4[%c0_4, %c0_5] : memref<512x1xf32, #tpu.memory_space<vmem>>, vector<512x1xf32>
    %5 = vector.broadcast %4 : vector<512x1xf32> to vector<512x256xf32>
    %6 = arith.addf %3, %5 : vector<512x256xf32>
    %cst_6 = arith.constant 0.000000e+00 : f32
    %7 = vector.broadcast %cst_6 : f32 to vector<512x256xf32>
    %8 = arith.maximumf %6, %7 : vector<512x256xf32>
    %c0_7 = arith.constant 0 : index
    %c0_8 = arith.constant 0 : index
    %9 = vector.load %arg5[%c0_7, %c0_8] : memref<1x512xf32, #tpu.memory_space<vmem>>, vector<1x512xf32>
    %cst_9 = arith.constant dense<0.000000e+00> : vector<1x256xf32>
    %10 = tpu.matmul %9, %8, %cst_9 {dimension_numbers = #tpu.dot_dimension_numbers<[1], [0], [0], [1], [0, 0, 1, 1], [], []>} : vector<1x512xf32>, vector<512x256xf32>, vector<1x256xf32> -> vector<1x256xf32>
    %c0_10 = arith.constant 0 : index
    %c0_11 = arith.constant 0 : index
    %11 = vector.load %arg6[%c0_10, %c0_11] : memref<1x1xf32, #tpu.memory_space<vmem>>, vector<1x1xf32>
    %12 = vector.broadcast %11 : vector<1x1xf32> to vector<1x256xf32>
    %13 = arith.addf %10, %12 : vector<1x256xf32>
    %cst_12 = arith.constant 2.000000e+01 : f32
    %14 = vector.broadcast %cst_12 : f32 to vector<1x256xf32>
    %15 = arith.cmpf ogt, %13, %14 : vector<1x256xf32>
    %cst_13 = arith.constant 2.000000e+01 : f32
    %16 = vector.broadcast %cst_13 : f32 to vector<1x256xf32>
    %17 = arith.minimumf %13, %16 : vector<1x256xf32>
    %18 = math.exp %17 : vector<1x256xf32>
    %19 = math.log1p %18 : vector<1x256xf32>
    %20 = arith.select %15, %13, %19 : vector<1x256xi1>, vector<1x256xf32>
    %c0_14 = arith.constant 0 : index
    %c0_15 = arith.constant 0 : index
    %c0_16 = arith.constant 0 : index
    %21 = vector.load %arg7[%c0_14, %c0_15, %c0_16] : memref<1x1x256xf32, #tpu.memory_space<vmem>>, vector<1x1x256xf32>
    %22 = vector.shape_cast %21 : vector<1x1x256xf32> to vector<1x256xf32>
    %23 = vector.shape_cast %20 : vector<1x256xf32> to vector<1x1x256xf32>
    tpu.vector_store %arg7[%c0_14, %c0_15, %c0_16], %23 {strides = array<i32>} : memref<1x1x256xf32, #tpu.memory_space<vmem>>, vector<1x1x256xf32>,
    return
  }
  func.func @transform_0(%arg0: i32, %arg1: i32) -> (i32, i32, i32) {
    %c0_i32 = arith.constant 0 : i32
    %c0_i32_0 = arith.constant 0 : i32
    return %arg0, %c0_i32, %arg1 : i32, i32, i32
  }
  func.func @transform_1(%arg0: i32, %arg1: i32) -> (i32, i32) {
    %c0_i32 = arith.constant 0 : i32
    %c0_i32_0 = arith.constant 0 : i32
    %c0_i32_1 = arith.constant 0 : i32
    return %c0_i32, %c0_i32_0 : i32, i32
  }
  func.func @transform_2(%arg0: i32, %arg1: i32) -> (i32, i32) {
    %c0_i32 = arith.constant 0 : i32
    %c0_i32_0 = arith.constant 0 : i32
    %c0_i32_1 = arith.constant 0 : i32
    return %c0_i32, %c0_i32_0 : i32, i32
  }
  func.func @transform_3(%arg0: i32, %arg1: i32) -> (i32, i32) {
    %c0_i32 = arith.constant 0 : i32
    %c0_i32_0 = arith.constant 0 : i32
    %c0_i32_1 = arith.constant 0 : i32
    return %c0_i32, %c0_i32_0 : i32, i32
  }
  func.func @transform_4(%arg0: i32, %arg1: i32) -> (i32, i32) {
    %c0_i32 = arith.constant 0 : i32
    %c0_i32_0 = arith.constant 0 : i32
    %c0_i32_1 = arith.constant 0 : i32
    return %c0_i32, %c0_i32_0 : i32, i32
  }
  func.func @transform_5(%arg0: i32, %arg1: i32) -> (i32, i32, i32) {
    %c0_i32 = arith.constant 0 : i32
    %c0_i32_0 = arith.constant 0 : i32
    return %arg0, %c0_i32, %arg1 : i32, i32, i32
  }
}

</mosaic_0001>

<llo_original>
// kernel: tpu_custom_call.1
$region0: #{tpu_custom_call.1}
  #allocation0 [shape = 'u32[]', space=smem, size = 0x4, offset = 0x4, fixed_abs, tag = 'smem constant byte address 0x4 - core index']
  #allocation1 [shape = 'u32[144,128]{1,0:T(1,128)}', space=vmem, size = 0x12000, scoped, tag = 'internal scratch']
  #allocation2 [shape = 'f32[1,1]{1,0:T(1,128)S(1)}', space=vmem, size = 0x200, scoped, tag = 'scoped memory for tpu_custom_call.1']
  %s0 = inlined_call_operand.vmem [shape: f32[2,4,256], index: 0, kind: input, shape index: {}]
  %s1 = inlined_call_operand.vmem [shape: f32[512,4], index: 1, kind: input, shape index: {}]
  %s2 = inlined_call_operand.vmem [shape: f32[512,1], index: 2, kind: input, shape index: {}]
  %s3 = inlined_call_operand.vmem [shape: f32[1,512], index: 3, kind: input, shape index: {}]
  %s4 = inlined_call_operand.<no memory space> [shape: f32[1,1], index: 4, kind: input, shape index: {}]
  %s5 = inlined_call_operand.hbm [shape: f32[2,1,256], index: 5, kind: output, shape index: {}]
  %s6 = sld [smem:[#allocation0]]
  $region53: #{tpu_custom_call.1} parent=0
    _
  %s8 = ssub.s32 1, %s6
  %s9 = scalar_select 0, %s8, %s6
  %v10 = vstv %s4
  %11 = vst [vmem:[#allocation2] sm:$0x1] %v10
  $region1: #{tpu_custom_call.1} parent=0
    #allocation3 [shape = 'u8[2048]{0}', space=vmem, size = 0x800, scoped, tag = 'output window, operand 0']
    #allocation4 [shape = 's32[2]{0}', space=sflag, size = 0x8, scoped, tag = 'scoped memory for tpu_custom_call.1']
    %12 = vsyncpa [#allocation4], 0
    %s13 = scalar_lea.sflag [#allocation4], 1
    %14 = vsyncpa %s13, 0
    loop: start=0, step=1, limit=4
    $region2: #{tpu_custom_call.1} parent=1 // loop_pre_header
      _
    $region3: #{tpu_custom_call.1} parent=1 // loop_header
      %s16 = sphi 0, %s20
      %p17 = scmp.ge.s32.totalorder %s16, 4
      %s23 = sphi 0, %s35
      %s24 = sphi 0, %s31
      %s25 = sphi 0, %s23
      %s26 = sphi 0, %s24
      %s27 = sphi 0, %s25
      %s28 = sphi 0, %s26
      %s40 = sphi 0, %s42
      %s43 = sphi 0, %s40
      %s44 = sphi 0, %s43
      %s60 = sphi 0, %s44
      %s64 = sphi 0, %s64
      %s66 = sphi 0, %s64
      %s67 = sphi 0, %s66
      %s81 = sphi 0, %s67
      %s85 = sphi 0, %s85
      %s87 = sphi 0, %s85
      %s88 = sphi 0, %s87
      %s102 = sphi 0, %s88
      %s106 = sphi 0, %s106
      %s108 = sphi 0, %s106
      %s109 = sphi 0, %s108
      %s123 = sphi 0, %s109
      %s127 = sphi 0, %s127
      %s129 = sphi 0, %s127
      %s130 = sphi 0, %s129
      %s144 = sphi 0, %s130
      %s152 = sphi 0, %s154
      %s155 = sphi 0, %s152
      %s156 = sphi 0, %s155
      %s172 = sphi 0, %s156
    $region4: #{tpu_custom_call.1} parent=1 // loop_header_branch
      %19 = sbr.rel (%p17) target = $region8
    $region5: #{tpu_custom_call.1} parent=1 // loop_body
      %s21 = ssub.s32 %s16, 1
      %s22 = ssub.s32 %s16, 2
      %s29 = sadd.s32 1, %s24
      %p30 = scmp.ge.s32.totalorder %s29, 1
      %s31 = scalar_select %p30, 0, %s29
      %s32 = sadd.s32 1, %s23
      %s33 = scalar_select %p30, %s32, %s23
      %p34 = scmp.ge.s32.totalorder %s33, 2
      %s35 = scalar_select %p34, 0, %s33
      %s36 = ssub.s32 %s23, %s35
      %s37 = ssub.s32 %s24, %s31
      %s38 = sor.u32 %s36, %s37
      %p39 = scmp.eq.s32.totalorder %s38, 0
      %s41 = sadd.s32 %s40, 1
      %s42 = scalar_select %p39, %s40, %s41
      %p45 = pneg %p39
      %p46 = scmp.eq.s32.totalorder %s16, 1
      %p47 = por %p45, %p46
      %p48 = scmp.ne.s32.totalorder %s40, %s43
      %p49 = scmp.eq.s32.totalorder %s16, 0
      %p50 = por %p48, %p49
      %p51 = scmp.ne.s32.totalorder %s40, %s43
      %p52 = scmp.eq.s32.totalorder %s21, 1
      %p53 = por %p51, %p52
      %p54 = scmp.ne.s32.totalorder %s43, %s44
      %p55 = scmp.eq.s32.totalorder %s21, 0
      %p56 = por %p54, %p55
      %p57 = scmp.ne.s32.totalorder %s43, %s44
      %p58 = scmp.eq.s32.totalorder %s22, 1
      %p59 = por %p57, %p58
      %p61 = scmp.ne.s32.totalorder %s44, %s60
      %p62 = scmp.eq.s32.totalorder %s22, 0
      %p63 = por %p61, %p62
      %s65 = sadd.s32 %s64, 1
      %p68 = scmp.eq.s32.totalorder %s16, 1
      %p69 = scmp.ne.s32.totalorder %s64, %s66
      %p70 = scmp.eq.s32.totalorder %s16, 0
      %p71 = por %p69, %p70
      %p72 = scmp.ne.s32.totalorder %s64, %s66
      %p73 = scmp.eq.s32.totalorder %s21, 1
      %p74 = por %p72, %p73
      %p75 = scmp.ne.s32.totalorder %s66, %s67
      %p76 = scmp.eq.s32.totalorder %s21, 0
      %p77 = por %p75, %p76
      %p78 = scmp.ne.s32.totalorder %s66, %s67
      %p79 = scmp.eq.s32.totalorder %s22, 1
      %p80 = por %p78, %p79
      %p82 = scmp.ne.s32.totalorder %s67, %s81
      %p83 = scmp.eq.s32.totalorder %s22, 0
      %p84 = por %p82, %p83
      %s86 = sadd.s32 %s85, 1
      %p89 = scmp.eq.s32.totalorder %s16, 1
      %p90 = scmp.ne.s32.totalorder %s85, %s87
      %p91 = scmp.eq.s32.totalorder %s16, 0
      %p92 = por %p90, %p91
      %p93 = scmp.ne.s32.totalorder %s85, %s87
      %p94 = scmp.eq.s32.totalorder %s21, 1
      %p95 = por %p93, %p94
      %p96 = scmp.ne.s32.totalorder %s87, %s88
      %p97 = scmp.eq.s32.totalorder %s21, 0
      %p98 = por %p96, %p97
      %p99 = scmp.ne.s32.totalorder %s87, %s88
      %p100 = scmp.eq.s32.totalorder %s22, 1
      %p101 = por %p99, %p100
      %p103 = scmp.ne.s32.totalorder %s88, %s102
      %p104 = scmp.eq.s32.totalorder %s22, 0
      %p105 = por %p103, %p104
      %s107 = sadd.s32 %s106, 1
      %p110 = scmp.eq.s32.totalorder %s16, 1
      %p111 = scmp.ne.s32.totalorder %s106, %s108
      %p112 = scmp.eq.s32.totalorder %s16, 0
      %p113 = por %p111, %p112
      %p114 = scmp.ne.s32.totalorder %s106, %s108
      %p115 = scmp.eq.s32.totalorder %s21, 1
      %p116 = por %p114, %p115
      %p117 = scmp.ne.s32.totalorder %s108, %s109
      %p118 = scmp.eq.s32.totalorder %s21, 0
      %p119 = por %p117, %p118
      %p120 = scmp.ne.s32.totalorder %s108, %s109
      %p121 = scmp.eq.s32.totalorder %s22, 1
      %p122 = por %p120, %p121
      %p124 = scmp.ne.s32.totalorder %s109, %s123
      %p125 = scmp.eq.s32.totalorder %s22, 0
      %p126 = por %p124, %p125
      %s128 = sadd.s32 %s127, 1
      %p131 = scmp.eq.s32.totalorder %s16, 1
      %p132 = scmp.ne.s32.totalorder %s127, %s129
      %p133 = scmp.eq.s32.totalorder %s16, 0
      %p134 = por %p132, %p133
      %p135 = scmp.ne.s32.totalorder %s127, %s129
      %p136 = scmp.eq.s32.totalorder %s21, 1
      %p137 = por %p135, %p136
      %p138 = scmp.ne.s32.totalorder %s129, %s130
      %p139 = scmp.eq.s32.totalorder %s21, 0
      %p140 = por %p138, %p139
      %p141 = scmp.ne.s32.totalorder %s129, %s130
      %p142 = scmp.eq.s32.totalorder %s22, 1
      %p143 = por %p141, %p142
      %p145 = scmp.ne.s32.totalorder %s130, %s144
      %p146 = scmp.eq.s32.totalorder %s22, 0
      %p147 = por %p145, %p146
      %s148 = ssub.s32 %s23, %s35
      %s149 = ssub.s32 %s24, %s31
      %s150 = sor.u32 %s148, %s149
      %p151 = scmp.eq.s32.totalorder %s150, 0
      %s153 = sadd.s32 %s152, 1
      %s154 = scalar_select %p151, %s152, %s153
      %p157 = pneg %p151
      %p158 = scmp.eq.s32.totalorder %s16, 1
      %p159 = por %p157, %p158
      %p160 = scmp.ne.s32.totalorder %s152, %s155
      %p161 = scmp.eq.s32.totalorder %s16, 0
      %p162 = por %p160, %p161
      %p163 = scmp.ne.s32.totalorder %s152, %s155
      %p164 = scmp.eq.s32.totalorder %s21, 1
      %p165 = por %p163, %p164
      %p166 = scmp.ne.s32.totalorder %s155, %s156
      %p167 = scmp.eq.s32.totalorder %s21, 0
      %p168 = por %p166, %p167
      %p169 = scmp.ne.s32.totalorder %s155, %s156
      %p170 = scmp.eq.s32.totalorder %s22, 1
      %p171 = por %p169, %p170
      %p173 = scmp.ne.s32.totalorder %s156, %s172
      %p174 = scmp.eq.s32.totalorder %s22, 0
      %p175 = por %p173, %p174
      %p176 = scmp.le.s32.totalorder 1, %s16
      %p177 = scmp.lt.s32.totalorder %s16, 3
      %p178 = pnand %p176, %p177
      %p179 = pneg %p178
      // Predicated region
      $region9: #{tpu_custom_call.1} parent=5 // pred_check
        _
      $region10: #{tpu_custom_call.1} parent=5 // pred_check_branch
        %181 = sbr.rel (%p178) target = $region12
      $region11: #{tpu_custom_call.1} parent=5 // pred_region
        %s182 = ssub.s32 %s16, 1
        // Predicated region
        $region13: #{tpu_custom_call.1} parent=11 // pred_check
          %p183 = pneg %p77
        $region14: #{tpu_custom_call.1} parent=11 // pred_check_branch
          %185 = sbr.rel (%p183) target = $region16
        $region15: #{tpu_custom_call.1} parent=11 // pred_region
          _
        $region16: #{tpu_custom_call.1} parent=11 // pred_fallthru
          _
        // Predicated region
        $region17: #{tpu_custom_call.1} parent=11 // pred_check
          %p186 = pneg %p98
        $region18: #{tpu_custom_call.1} parent=11 // pred_check_branch
          %188 = sbr.rel (%p186) target = $region20
        $region19: #{tpu_custom_call.1} parent=11 // pred_region
          _
        $region20: #{tpu_custom_call.1} parent=11 // pred_fallthru
          _
        // Predicated region
        $region21: #{tpu_custom_call.1} parent=11 // pred_check
          %p189 = pneg %p119
        $region22: #{tpu_custom_call.1} parent=11 // pred_check_branch
          %191 = sbr.rel (%p189) target = $region24
        $region23: #{tpu_custom_call.1} parent=11 // pred_region
          _
        $region24: #{tpu_custom_call.1} parent=11 // pred_fallthru
          _
        // Predicated region
        $region25: #{tpu_custom_call.1} parent=11 // pred_check
          %p192 = pneg %p140
        $region26: #{tpu_custom_call.1} parent=11 // pred_check_branch
          %194 = sbr.rel (%p192) target = $region28
        $region27: #{tpu_custom_call.1} parent=11 // pred_region
          _
        $region28: #{tpu_custom_call.1} parent=11 // pred_fallthru
          _
      $region12: #{tpu_custom_call.1} parent=5 // pred_fallthru
        _
      %p195 = scmp.lt.s32.totalorder %s16, 2
      // Predicated region
      $region29: #{tpu_custom_call.1} parent=5 // pred_check
        %p196 = pneg %p195
      $region30: #{tpu_custom_call.1} parent=5 // pred_check_branch
        %198 = sbr.rel (%p196) target = $region32
      $region31: #{tpu_custom_call.1} parent=5 // pred_region
        // Predicated region
        $region33: #{tpu_custom_call.1} parent=31 // pred_check
          %p199 = pneg %p50
        $region34: #{tpu_custom_call.1} parent=31 // pred_check_branch
          %201 = sbr.rel (%p199) target = $region36
        $region35: #{tpu_custom_call.1} parent=31 // pred_region
          %s202 = smul.u32 2, %s24
          %p203 = scmp.lt.s32.totalorder %s23, 1
          %s204 = scalar_select %p203, %s23, 1
          %p205 = scmp.lt.s32.totalorder %s202, 1
          %s206 = scalar_select %p205, %s202, 1
          %s207 = smul.addr %s204, 2
          %s208 = sadd.s32 %s206, %s207
          %s209 = smul.addr %s208, 4
          %s210 = scalar_lea.vmem %s0, %s209
          %s211 = smul.u32 2, %s24
        $region36: #{tpu_custom_call.1} parent=31 // pred_fallthru
          _
      $region32: #{tpu_custom_call.1} parent=5 // pred_fallthru
        _
      %p212 = scmp.le.s32.totalorder 1, %s16
      %p213 = scmp.lt.s32.totalorder %s16, 3
      %p214 = pnand %p212, %p213
      %p215 = pneg %p214
      // Predicated region
      $region37: #{tpu_custom_call.1} parent=5 // pred_check
        _
      $region38: #{tpu_custom_call.1} parent=5 // pred_check_branch
        %217 = sbr.rel (%p214) target = $region40
      $region39: #{tpu_custom_call.1} parent=5 // pred_region
        %s218 = ssub.s32 %s16, 1
        %s219 = smul.u32 2, %s26
        %p220 = scmp.lt.s32.totalorder %s25, 1
        %s221 = scalar_select %p220, %s25, 1
        %p222 = scmp.lt.s32.totalorder %s219, 1
        %s223 = scalar_select %p222, %s219, 1
        %s224 = smul.addr %s221, 2
        %s225 = sadd.s32 %s223, %s224
        %s226 = smul.addr %s225, 4
        %s227 = scalar_lea.vmem %s0, %s226
        %p228 = pneg %p56
        %p229 = pneg %p53
        %p230 = pneg %p77
        %p231 = pneg %p74
        %p232 = pneg %p98
        %p233 = pneg %p95
        %p234 = pneg %p119
        %p235 = pneg %p116
        %p236 = pneg %p140
        %p237 = pneg %p137
        %p238 = pneg %p168
        %p239 = pneg %p165
        %s240 = sand.u32 %s155, 1
        %s241 = scalar_lea.sflag [#allocation4], %s240
        %s242 = sand.u32 %s155, 1
        %s243 = smul.addr %s242, 2
        %s244 = scalar_lea.vmem [#allocation3], %s243
        %s245 = smul.u32 2, %s26
        %p246 = scmp.lt.s32.totalorder %s25, 1
        %s247 = scalar_select %p246, %s25, 1
        %p248 = scmp.lt.s32.totalorder %s245, 1
        %s249 = scalar_select %p248, %s245, 1
        %s250 = smul.addr %s247, 2
        %s251 = sadd.s32 %s249, %s250
        %s252 = smul.addr %s251, 4
        %s253 = scalar_lea.vmem %s0, %s252
        %s254 = smul.u32 2, %s26
        %s255 = smul.u32 2, %s26
        %v256 = vld [vmem:[%s253] sm:$0xff]
        %v257 = vld [vmem:[%s1] sm:$0xff]
        %v258 = vld [vmem:[%s1 + $0x8] sm:$0xff]
        %v259 = vld [vmem:[%s1 + $0x10] sm:$0xff]
        %v260 = vld [vmem:[%s1 + $0x18] sm:$0xff]
        %v261 = vld [vmem:[%s1 + $0x20] sm:$0xff]
        %v262 = vld [vmem:[%s1 + $0x28] sm:$0xff]
        %v263 = vld [vmem:[%s1 + $0x30] sm:$0xff]
        %v264 = vld [vmem:[%s1 + $0x38] sm:$0xff]
        %v265 = vld [vmem:[%s1 + $0x40] sm:$0xff]
        %v266 = vld [vmem:[%s1 + $0x48] sm:$0xff]
        %v267 = vld [vmem:[%s1 + $0x50] sm:$0xff]
        %v268 = vld [vmem:[%s1 + $0x58] sm:$0xff]
        %v269 = vld [vmem:[%s1 + $0x60] sm:$0xff]
        %v270 = vld [vmem:[%s1 + $0x68] sm:$0xff]
        %v271 = vld [vmem:[%s1 + $0x70] sm:$0xff]
        %v272 = vld [vmem:[%s1 + $0x78] sm:$0xff]
        %v273 = vld [vmem:[%s1 + $0x80] sm:$0xff]
        %v274 = vld [vmem:[%s1 + $0x88] sm:$0xff]
        %v275 = vld [vmem:[%s1 + $0x90] sm:$0xff]
        %v276 = vld [vmem:[%s1 + $0x98] sm:$0xff]
        %v277 = vld [vmem:[%s1 + $0xa0] sm:$0xff]
        %v278 = vld [vmem:[%s1 + $0xa8] sm:$0xff]
        %v279 = vld [vmem:[%s1 + $0xb0] sm:$0xff]
        %v280 = vld [vmem:[%s1 + $0xb8] sm:$0xff]
        %v281 = vld [vmem:[%s1 + $0xc0] sm:$0xff]
        %v282 = vld [vmem:[%s1 + $0xc8] sm:$0xff]
        %v283 = vld [vmem:[%s1 + $0xd0] sm:$0xff]
        %v284 = vld [vmem:[%s1 + $0xd8] sm:$0xff]
        %v285 = vld [vmem:[%s1 + $0xe0] sm:$0xff]
        %v286 = vld [vmem:[%s1 + $0xe8] sm:$0xff]
        %v287 = vld [vmem:[%s1 + $0xf0] sm:$0xff]
        %v288 = vld [vmem:[%s1 + $0xf8] sm:$0xff]
        %v289 = vld [vmem:[%s1 + $0x100] sm:$0xff]
        %v290 = vld [vmem:[%s1 + $0x108] sm:$0xff]
        %v291 = vld [vmem:[%s1 + $0x110] sm:$0xff]
        %v292 = vld [vmem:[%s1 + $0x118] sm:$0xff]
        %v293 = vld [vmem:[%s1 + $0x120] sm:$0xff]
        %v294 = vld [vmem:[%s1 + $0x128] sm:$0xff]
        %v295 = vld [vmem:[%s1 + $0x130] sm:$0xff]
        %v296 = vld [vmem:[%s1 + $0x138] sm:$0xff]
        %v297 = vld [vmem:[%s1 + $0x140] sm:$0xff]
        %v298 = vld [vmem:[%s1 + $0x148] sm:$0xff]
        %v299 = vld [vmem:[%s1 + $0x150] sm:$0xff]
        %v300 = vld [vmem:[%s1 + $0x158] sm:$0xff]
        %v301 = vld [vmem:[%s1 + $0x160] sm:$0xff]
        %v302 = vld [vmem:[%s1 + $0x168] sm:$0xff]
        %v303 = vld [vmem:[%s1 + $0x170] sm:$0xff]
        %v304 = vld [vmem:[%s1 + $0x178] sm:$0xff]
        %v305 = vld [vmem:[%s1 + $0x180] sm:$0xff]
        %v306 = vld [vmem:[%s1 + $0x188] sm:$0xff]
        %v307 = vld [vmem:[%s1 + $0x190] sm:$0xff]
        %v308 = vld [vmem:[%s1 + $0x198] sm:$0xff]
        %v309 = vld [vmem:[%s1 + $0x1a0] sm:$0xff]
        %v310 = vld [vmem:[%s1 + $0x1a8] sm:$0xff]
        %v311 = vld [vmem:[%s1 + $0x1b0] sm:$0xff]
        %v312 = vld [vmem:[%s1 + $0x1b8] sm:$0xff]
        %v313 = vld [vmem:[%s1 + $0x1c0] sm:$0xff]
        %v314 = vld [vmem:[%s1 + $0x1c8] sm:$0xff]
        %v315 = vld [vmem:[%s1 + $0x1d0] sm:$0xff]
        %v316 = vld [vmem:[%s1 + $0x1d8] sm:$0xff]
        %v317 = vld [vmem:[%s1 + $0x1e0] sm:$0xff]
        %v318 = vld [vmem:[%s1 + $0x1e8] sm:$0xff]
        %v319 = vld [vmem:[%s1 + $0x1f0] sm:$0xff]
        %v320 = vld [vmem:[%s1 + $0x1f8] sm:$0xff]
        %v321 = vld [vmem:[%s2] sm:$0xff]
        %v322 = vld [vmem:[%s2 + $0x8] sm:$0xff]
        %v323 = vld [vmem:[%s2 + $0x10] sm:$0xff]
        %v324 = vld [vmem:[%s2 + $0x18] sm:$0xff]
        %v325 = vld [vmem:[%s2 + $0x20] sm:$0xff]
        %v326 = vld [vmem:[%s2 + $0x28] sm:$0xff]
        %v327 = vld [vmem:[%s2 + $0x30] sm:$0xff]
        %v328 = vld [vmem:[%s2 + $0x38] sm:$0xff]
        %v329 = vld [vmem:[%s2 + $0x40] sm:$0xff]
        %v330 = vld [vmem:[%s2 + $0x48] sm:$0xff]
        %v331 = vld [vmem:[%s2 + $0x50] sm:$0xff]
        %v332 = vld [vmem:[%s2 + $0x58] sm:$0xff]
        %v333 = vld [vmem:[%s2 + $0x60] sm:$0xff]
        %v334 = vld [vmem:[%s2 + $0x68] sm:$0xff]
        %v335 = vld [vmem:[%s2 + $0x70] sm:$0xff]
        %v336 = vld [vmem:[%s2 + $0x78] sm:$0xff]
        %v337 = vld [vmem:[%s2 + $0x80] sm:$0xff]
        %v338 = vld [vmem:[%s2 + $0x88] sm:$0xff]
        %v339 = vld [vmem:[%s2 + $0x90] sm:$0xff]
        %v340 = vld [vmem:[%s2 + $0x98] sm:$0xff]
        %v341 = vld [vmem:[%s2 + $0xa0] sm:$0xff]
        %v342 = vld [vmem:[%s2 + $0xa8] sm:$0xff]
        %v343 = vld [vmem:[%s2 + $0xb0] sm:$0xff]
        %v344 = vld [vmem:[%s2 + $0xb8] sm:$0xff]
        %v345 = vld [vmem:[%s2 + $0xc0] sm:$0xff]
        %v346 = vld [vmem:[%s2 + $0xc8] sm:$0xff]
        %v347 = vld [vmem:[%s2 + $0xd0] sm:$0xff]
        %v348 = vld [vmem:[%s2 + $0xd8] sm:$0xff]
        %v349 = vld [vmem:[%s2 + $0xe0] sm:$0xff]
        %v350 = vld [vmem:[%s2 + $0xe8] sm:$0xff]
        %v351 = vld [vmem:[%s2 + $0xf0] sm:$0xff]
        %v352 = vld [vmem:[%s2 + $0xf8] sm:$0xff]
        %v353 = vld [vmem:[%s2 + $0x100] sm:$0xff]
        %v354 = vld [vmem:[%s2 + $0x108] sm:$0xff]
        %v355 = vld [vmem:[%s2 + $0x110] sm:$0xff]
        %v356 = vld [vmem:[%s2 + $0x118] sm:$0xff]
        %v357 = vld [vmem:[%s2 + $0x120] sm:$0xff]
        %v358 = vld [vmem:[%s2 + $0x128] sm:$0xff]
        %v359 = vld [vmem:[%s2 + $0x130] sm:$0xff]
        %v360 = vld [vmem:[%s2 + $0x138] sm:$0xff]
        %v361 = vld [vmem:[%s2 + $0x140] sm:$0xff]
        %v362 = vld [vmem:[%s2 + $0x148] sm:$0xff]
        %v363 = vld [vmem:[%s2 + $0x150] sm:$0xff]
        %v364 = vld [vmem:[%s2 + $0x158] sm:$0xff]
        %v365 = vld [vmem:[%s2 + $0x160] sm:$0xff]
        %v366 = vld [vmem:[%s2 + $0x168] sm:$0xff]
        %v367 = vld [vmem:[%s2 + $0x170] sm:$0xff]
        %v368 = vld [vmem:[%s2 + $0x178] sm:$0xff]
        %v369 = vld [vmem:[%s2 + $0x180] sm:$0xff]
        %v370 = vld [vmem:[%s2 + $0x188] sm:$0xff]
        %v371 = vld [vmem:[%s2 + $0x190] sm:$0xff]
        %v372 = vld [vmem:[%s2 + $0x198] sm:$0xff]
        %v373 = vld [vmem:[%s2 + $0x1a0] sm:$0xff]
        %v374 = vld [vmem:[%s2 + $0x1a8] sm:$0xff]
        %v375 = vld [vmem:[%s2 + $0x1b0] sm:$0xff]
        %v376 = vld [vmem:[%s2 + $0x1b8] sm:$0xff]
        %v377 = vld [vmem:[%s2 + $0x1c0] sm:$0xff]
        %v378 = vld [vmem:[%s2 + $0x1c8] sm:$0xff]
        %v379 = vld [vmem:[%s2 + $0x1d0] sm:$0xff]
        %v380 = vld [vmem:[%s2 + $0x1d8] sm:$0xff]
        %v381 = vld [vmem:[%s2 + $0x1e0] sm:$0xff]
        %v382 = vld [vmem:[%s2 + $0x1e8] sm:$0xff]
        %v383 = vld [vmem:[%s2 + $0x1f0] sm:$0xff]
        %v384 = vld [vmem:[%s2 + $0x1f8] sm:$0xff]
        %386 = vset.pattern.permute.xlu0 0
        %387 = vperm.xlu0 %386, %v321
        %v388 = vpop.permute.xlu0 %387
        %391 = vset.pattern.permute.xlu0 0
        %392 = vperm.xlu0 %391, %v322
        %v393 = vpop.permute.xlu0 %392
        %396 = vset.pattern.permute.xlu0 0
        %397 = vperm.xlu0 %396, %v323
        %v398 = vpop.permute.xlu0 %397
        %401 = vset.pattern.permute.xlu0 0
        %402 = vperm.xlu0 %401, %v324
        %v403 = vpop.permute.xlu0 %402
        %406 = vset.pattern.permute.xlu0 0
        %407 = vperm.xlu0 %406, %v325
        %v408 = vpop.permute.xlu0 %407
        %411 = vset.pattern.permute.xlu0 0
        %412 = vperm.xlu0 %411, %v326
        %v413 = vpop.permute.xlu0 %412
        %416 = vset.pattern.permute.xlu0 0
        %417 = vperm.xlu0 %416, %v327
        %v418 = vpop.permute.xlu0 %417
        %421 = vset.pattern.permute.xlu0 0
        %422 = vperm.xlu0 %421, %v328
        %v423 = vpop.permute.xlu0 %422
        %426 = vset.pattern.permute.xlu0 0
        %427 = vperm.xlu0 %426, %v329
        %v428 = vpop.permute.xlu0 %427
        %431 = vset.pattern.permute.xlu0 0
        %432 = vperm.xlu0 %431, %v330
        %v433 = vpop.permute.xlu0 %432
        %436 = vset.pattern.permute.xlu0 0
        %437 = vperm.xlu0 %436, %v331
        %v438 = vpop.permute.xlu0 %437
        %441 = vset.pattern.permute.xlu0 0
        %442 = vperm.xlu0 %441, %v332
        %v443 = vpop.permute.xlu0 %442
        %446 = vset.pattern.permute.xlu0 0
        %447 = vperm.xlu0 %446, %v333
        %v448 = vpop.permute.xlu0 %447
        %451 = vset.pattern.permute.xlu0 0
        %452 = vperm.xlu0 %451, %v334
        %v453 = vpop.permute.xlu0 %452
        %456 = vset.pattern.permute.xlu0 0
        %457 = vperm.xlu0 %456, %v335
        %v458 = vpop.permute.xlu0 %457
        %461 = vset.pattern.permute.xlu0 0
        %462 = vperm.xlu0 %461, %v336
        %v463 = vpop.permute.xlu0 %462
        %466 = vset.pattern.permute.xlu0 0
        %467 = vperm.xlu0 %466, %v337
        %v468 = vpop.permute.xlu0 %467
        %471 = vset.pattern.permute.xlu0 0
        %472 = vperm.xlu0 %471, %v338
        %v473 = vpop.permute.xlu0 %472
        %476 = vset.pattern.permute.xlu0 0
        %477 = vperm.xlu0 %476, %v339
        %v478 = vpop.permute.xlu0 %477
        %481 = vset.pattern.permute.xlu0 0
        %482 = vperm.xlu0 %481, %v340
        %v483 = vpop.permute.xlu0 %482
        %486 = vset.pattern.permute.xlu0 0
        %487 = vperm.xlu0 %486, %v341
        %v488 = vpop.permute.xlu0 %487
        %491 = vset.pattern.permute.xlu0 0
        %492 = vperm.xlu0 %491, %v342
        %v493 = vpop.permute.xlu0 %492
        %496 = vset.pattern.permute.xlu0 0
        %497 = vperm.xlu0 %496, %v343
        %v498 = vpop.permute.xlu0 %497
        %501 = vset.pattern.permute.xlu0 0
        %502 = vperm.xlu0 %501, %v344
        %v503 = vpop.permute.xlu0 %502
        %506 = vset.pattern.permute.xlu0 0
        %507 = vperm.xlu0 %506, %v345
        %v508 = vpop.permute.xlu0 %507
        %511 = vset.pattern.permute.xlu0 0
        %512 = vperm.xlu0 %511, %v346
        %v513 = vpop.permute.xlu0 %512
        %516 = vset.pattern.permute.xlu0 0
        %517 = vperm.xlu0 %516, %v347
        %v518 = vpop.permute.xlu0 %517
        %521 = vset.pattern.permute.xlu0 0
        %522 = vperm.xlu0 %521, %v348
        %v523 = vpop.permute.xlu0 %522
        %526 = vset.pattern.permute.xlu0 0
        %527 = vperm.xlu0 %526, %v349
        %v528 = vpop.permute.xlu0 %527
        %531 = vset.pattern.permute.xlu0 0
        %532 = vperm.xlu0 %531, %v350
        %v533 = vpop.permute.xlu0 %532
        %536 = vset.pattern.permute.xlu0 0
        %537 = vperm.xlu0 %536, %v351
        %v538 = vpop.permute.xlu0 %537
        %541 = vset.pattern.permute.xlu0 0
        %542 = vperm.xlu0 %541, %v352
        %v543 = vpop.permute.xlu0 %542
        %546 = vset.pattern.permute.xlu0 0
        %547 = vperm.xlu0 %546, %v353
        %v548 = vpop.permute.xlu0 %547
        %551 = vset.pattern.permute.xlu0 0
        %552 = vperm.xlu0 %551, %v354
        %v553 = vpop.permute.xlu0 %552
        %556 = vset.pattern.permute.xlu0 0
        %557 = vperm.xlu0 %556, %v355
        %v558 = vpop.permute.xlu0 %557
        %561 = vset.pattern.permute.xlu0 0
        %562 = vperm.xlu0 %561, %v356
        %v563 = vpop.permute.xlu0 %562
        %566 = vset.pattern.permute.xlu0 0
        %567 = vperm.xlu0 %566, %v357
        %v568 = vpop.permute.xlu0 %567
        %571 = vset.pattern.permute.xlu0 0
        %572 = vperm.xlu0 %571, %v358
        %v573 = vpop.permute.xlu0 %572
        %576 = vset.pattern.permute.xlu0 0
        %577 = vperm.xlu0 %576, %v359
        %v578 = vpop.permute.xlu0 %577
        %581 = vset.pattern.permute.xlu0 0
        %582 = vperm.xlu0 %581, %v360
        %v583 = vpop.permute.xlu0 %582
        %586 = vset.pattern.permute.xlu0 0
        %587 = vperm.xlu0 %586, %v361
        %v588 = vpop.permute.xlu0 %587
        %591 = vset.pattern.permute.xlu0 0
        %592 = vperm.xlu0 %591, %v362
        %v593 = vpop.permute.xlu0 %592
        %596 = vset.pattern.permute.xlu0 0
        %597 = vperm.xlu0 %596, %v363
        %v598 = vpop.permute.xlu0 %597
        %601 = vset.pattern.permute.xlu0 0
        %602 = vperm.xlu0 %601, %v364
        %v603 = vpop.permute.xlu0 %602
        %606 = vset.pattern.permute.xlu0 0
        %607 = vperm.xlu0 %606, %v365
        %v608 = vpop.permute.xlu0 %607
        %611 = vset.pattern.permute.xlu0 0
        %612 = vperm.xlu0 %611, %v366
        %v613 = vpop.permute.xlu0 %612
        %616 = vset.pattern.permute.xlu0 0
        %617 = vperm.xlu0 %616, %v367
        %v618 = vpop.permute.xlu0 %617
        %621 = vset.pattern.permute.xlu0 0
        %622 = vperm.xlu0 %621, %v368
        %v623 = vpop.permute.xlu0 %622
        %626 = vset.pattern.permute.xlu0 0
        %627 = vperm.xlu0 %626, %v369
        %v628 = vpop.permute.xlu0 %627
        %631 = vset.pattern.permute.xlu0 0
        %632 = vperm.xlu0 %631, %v370
        %v633 = vpop.permute.xlu0 %632
        %636 = vset.pattern.permute.xlu0 0
        %637 = vperm.xlu0 %636, %v371
        %v638 = vpop.permute.xlu0 %637
        %641 = vset.pattern.permute.xlu0 0
        %642 = vperm.xlu0 %641, %v372
        %v643 = vpop.permute.xlu0 %642
        %646 = vset.pattern.permute.xlu0 0
        %647 = vperm.xlu0 %646, %v373
        %v648 = vpop.permute.xlu0 %647
        %651 = vset.pattern.permute.xlu0 0
        %652 = vperm.xlu0 %651, %v374
        %v653 = vpop.permute.xlu0 %652
        %656 = vset.pattern.permute.xlu0 0
        %657 = vperm.xlu0 %656, %v375
        %v658 = vpop.permute.xlu0 %657
        %661 = vset.pattern.permute.xlu0 0
        %662 = vperm.xlu0 %661, %v376
        %v663 = vpop.permute.xlu0 %662
        %666 = vset.pattern.permute.xlu0 0
        %667 = vperm.xlu0 %666, %v377
        %v668 = vpop.permute.xlu0 %667
        %671 = vset.pattern.permute.xlu0 0
        %672 = vperm.xlu0 %671, %v378
        %v673 = vpop.permute.xlu0 %672
        %676 = vset.pattern.permute.xlu0 0
        %677 = vperm.xlu0 %676, %v379
        %v678 = vpop.permute.xlu0 %677
        %681 = vset.pattern.permute.xlu0 0
        %682 = vperm.xlu0 %681, %v380
        %v683 = vpop.permute.xlu0 %682
        %686 = vset.pattern.permute.xlu0 0
        %687 = vperm.xlu0 %686, %v381
        %v688 = vpop.permute.xlu0 %687
        %691 = vset.pattern.permute.xlu0 0
        %692 = vperm.xlu0 %691, %v382
        %v693 = vpop.permute.xlu0 %692
        %696 = vset.pattern.permute.xlu0 0
        %697 = vperm.xlu0 %696, %v383
        %v698 = vpop.permute.xlu0 %697
        %701 = vset.pattern.permute.xlu0 0
        %702 = vperm.xlu0 %701, %v384
        %v703 = vpop.permute.xlu0 %702
        %v706 = vcombine.high %v256, %v256
        %vm707 = vcmask 31744
        %v709 = vsel %vm707, %v257, 0
        %v712 = vsel %vm707, %v258, 0
        %v715 = vsel %vm707, %v259, 0
        %v718 = vsel %vm707, %v260, 0
        %v721 = vsel %vm707, %v261, 0
        %v724 = vsel %vm707, %v262, 0
        %v727 = vsel %vm707, %v263, 0
        %v730 = vsel %vm707, %v264, 0
        %v733 = vsel %vm707, %v265, 0
        %v736 = vsel %vm707, %v266, 0
        %v739 = vsel %vm707, %v267, 0
        %v742 = vsel %vm707, %v268, 0
        %v745 = vsel %vm707, %v269, 0
        %v748 = vsel %vm707, %v270, 0
        %v751 = vsel %vm707, %v271, 0
        %v754 = vsel %vm707, %v272, 0
        %v757 = vsel %vm707, %v273, 0
        %v760 = vsel %vm707, %v274, 0
        %v763 = vsel %vm707, %v275, 0
        %v766 = vsel %vm707, %v276, 0
        %v769 = vsel %vm707, %v277, 0
        %v772 = vsel %vm707, %v278, 0
        %v775 = vsel %vm707, %v279, 0
        %v778 = vsel %vm707, %v280, 0
        %v781 = vsel %vm707, %v281, 0
        %v784 = vsel %vm707, %v282, 0
        %v787 = vsel %vm707, %v283, 0
        %v790 = vsel %vm707, %v284, 0
        %v793 = vsel %vm707, %v285, 0
        %v796 = vsel %vm707, %v286, 0
        %v799 = vsel %vm707, %v287, 0
        %v802 = vsel %vm707, %v288, 0
        %v805 = vsel %vm707, %v289, 0
        %v808 = vsel %vm707, %v290, 0
        %v811 = vsel %vm707, %v291, 0
        %v814 = vsel %vm707, %v292, 0
        %v817 = vsel %vm707, %v293, 0
        %v820 = vsel %vm707, %v294, 0
        %v823 = vsel %vm707, %v295, 0
        %v826 = vsel %vm707, %v296, 0
        %v829 = vsel %vm707, %v297, 0
        %v832 = vsel %vm707, %v298, 0
        %v835 = vsel %vm707, %v299, 0
        %v838 = vsel %vm707, %v300, 0
        %v841 = vsel %vm707, %v301, 0
        %v844 = vsel %vm707, %v302, 0
        %v847 = vsel %vm707, %v303, 0
        %v850 = vsel %vm707, %v304, 0
        %v853 = vsel %vm707, %v305, 0
        %v856 = vsel %vm707, %v306, 0
        %v859 = vsel %vm707, %v307, 0
        %v862 = vsel %vm707, %v308, 0
        %v865 = vsel %vm707, %v309, 0
        %v868 = vsel %vm707, %v310, 0
        %v871 = vsel %vm707, %v311, 0
        %v874 = vsel %vm707, %v312, 0
        %v877 = vsel %vm707, %v313, 0
        %v880 = vsel %vm707, %v314, 0
        %v883 = vsel %vm707, %v315, 0
        %v886 = vsel %vm707, %v316, 0
        %v889 = vsel %vm707, %v317, 0
        %v892 = vsel %vm707, %v318, 0
        %v895 = vsel %vm707, %v319, 0
        %v898 = vsel %vm707, %v320, 0
        %vm900 = vcmask 1043456
        %v901 = vsel %vm900, %v256, 0
        %v903 = vsel %vm900, %v706, 0
        %905 = vmatprep.subr.mxu0 %v903
        %906 = vmatpush1.msra.mxu0 %v901
        %907 = vmatprep.subr.mxu0 0.0
        %908 = vmatpush1.msra.mxu0 0.0
        %909 = vmatprep.subr.mxu0 0.0
        %910 = vmatpush1.msra.mxu0 0.0
        %911 = vmatprep.subr.mxu0 0.0
        %912 = vmatpush1.msra.mxu0 0.0
        %913 = vmatprep.subr.mxu0 0.0
        %914 = vmatpush1.msra.mxu0 0.0
        %915 = vmatprep.subr.mxu0 0.0
        %916 = vmatpush1.msra.mxu0 0.0
        %917 = vmatprep.subr.mxu0 0.0
        %918 = vmatpush1.msra.mxu0 0.0
        %919 = vmatprep.subr.mxu0 0.0
        %920 = vmatpush1.msra.mxu0 0.0
        %921 = vmatprep.subr.mxu0 0.0
        %922 = vmatpush1.msra.mxu0 0.0
        %923 = vmatprep.subr.mxu0 0.0
        %924 = vmatpush1.msra.mxu0 0.0
        %925 = vmatprep.subr.mxu0 0.0
        %926 = vmatpush1.msra.mxu0 0.0
        %927 = vmatprep.subr.mxu0 0.0
        %928 = vmatpush1.msra.mxu0 0.0
        %929 = vmatprep.subr.mxu0 0.0
        %930 = vmatpush1.msra.mxu0 0.0
        %931 = vmatprep.subr.mxu0 0.0
        %932 = vmatpush1.msra.mxu0 0.0
        %933 = vmatprep.subr.mxu0 0.0
        %934 = vmatpush1.msra.mxu0 0.0
        %935 = vmatprep.subr.mxu0 0.0
        %936 = vmatpush1.msra.mxu0 0.0
        %937 = vmatprep.subr.mxu0 0.0
        %938 = vmatpush1.msra.mxu0 0.0
        %939 = vmatprep.subr.mxu0 0.0
        %940 = vmatpush1.msra.mxu0 0.0
        %941 = vmatprep.subr.mxu0 0.0
        %942 = vmatpush1.msra.mxu0 0.0
        %943 = vmatprep.subr.mxu0 0.0
        %944 = vmatpush1.msra.mxu0 0.0
        %945 = vmatprep.subr.mxu0 0.0
        %946 = vmatpush1.msra.mxu0 0.0
        %947 = vmatprep.subr.mxu0 0.0
        %948 = vmatpush1.msra.mxu0 0.0
        %949 = vmatprep.subr.mxu0 0.0
        %950 = vmatpush1.msra.mxu0 0.0
        %951 = vmatprep.subr.mxu0 0.0
        %952 = vmatpush1.msra.mxu0 0.0
        %953 = vmatprep.subr.mxu0 0.0
        %954 = vmatpush1.msra.mxu0 0.0
        %955 = vmatprep.subr.mxu0 0.0
        %956 = vmatpush1.msra.mxu0 0.0
        %957 = vmatprep.subr.mxu0 0.0
        %958 = vmatpush1.msra.mxu0 0.0
        %959 = vmatprep.subr.mxu0 0.0
        %960 = vmatpush1.msra.mxu0 0.0
        %961 = vmatprep.subr.mxu0 0.0
        %962 = vmatpush1.msra.mxu0 0.0
        %963 = vmatprep.subr.mxu0 0.0
        %964 = vmatpush1.msra.mxu0 0.0
        %965 = vmatprep.subr.mxu0 0.0
        %966 = vmatpush1.msra.mxu0 0.0
        %967 = vmatprep.subr.mxu0 0.0
        %968 = vmatpush1.msra.mxu0 0.0
        %969 = vmatprep.mubr.f32.mxu0 0.0
        %970 = vmatmul.mubr.f32.gmra.mrb[0].mxu0 %v709
        %v971 = vpop.f32.mrb[0].mxu0
        %v972 = vadd.f32 %v388, %v971
        %v973 = vpop.f32.mrb[0].mxu0
        %v974 = vadd.f32 %v388, %v973
        %975 = vmatprep.mubr.f32.mxu0 0.0
        %976 = vmatmul.mubr.f32.gmra.mrb[0].mxu0 %v712
        %v977 = vpop.f32.mrb[0].mxu0
        %v978 = vadd.f32 %v393, %v977
        %v979 = vpop.f32.mrb[0].mxu0
        %v980 = vadd.f32 %v393, %v979
        %981 = vmatprep.mubr.f32.mxu0 0.0
        %982 = vmatmul.mubr.f32.gmra.mrb[0].mxu0 %v715
        %v983 = vpop.f32.mrb[0].mxu0
        %v984 = vadd.f32 %v398, %v983
        %v985 = vpop.f32.mrb[0].mxu0
        %v986 = vadd.f32 %v398, %v985
        %987 = vmatprep.mubr.f32.mxu0 0.0
        %988 = vmatmul.mubr.f32.gmra.mrb[0].mxu0 %v718
        %v989 = vpop.f32.mrb[0].mxu0
        %v990 = vadd.f32 %v403, %v989
        %v991 = vpop.f32.mrb[0].mxu0
        %v992 = vadd.f32 %v403, %v991
        %993 = vmatprep.mubr.f32.mxu0 0.0
        %994 = vmatmul.mubr.f32.gmra.mrb[0].mxu0 %v721
        %v995 = vpop.f32.mrb[0].mxu0
        %v996 = vadd.f32 %v408, %v995
        %v997 = vpop.f32.mrb[0].mxu0
        %v998 = vadd.f32 %v408, %v997
        %999 = vmatprep.mubr.f32.mxu0 0.0
        %1000 = vmatmul.mubr.f32.gmra.mrb[0].mxu0 %v724
        %v1001 = vpop.f32.mrb[0].mxu0
        %v1002 = vadd.f32 %v413, %v1001
        %v1003 = vpop.f32.mrb[0].mxu0
        %v1004 = vadd.f32 %v413, %v1003
        %1005 = vmatprep.mubr.f32.mxu0 0.0
        %1006 = vmatmul.mubr.f32.gmra.mrb[0].mxu0 %v727
        %v1007 = vpop.f32.mrb[0].mxu0
        %v1008 = vadd.f32 %v418, %v1007
        %v1009 = vpop.f32.mrb[0].mxu0
        %v1010 = vadd.f32 %v418, %v1009
        %1011 = vmatprep.mubr.f32.mxu0 0.0
        %1012 = vmatmul.mubr.f32.gmra.mrb[0].mxu0 %v730
        %v1013 = vpop.f32.mrb[0].mxu0
        %v1014 = vadd.f32 %v423, %v1013
        %v1015 = vpop.f32.mrb[0].mxu0
        %v1016 = vadd.f32 %v423, %v1015
        %1017 = vmatprep.mubr.f32.mxu0 0.0
        %1018 = vmatmul.mubr.f32.gmra.mrb[0].mxu0 %v733
        %v1019 = vpop.f32.mrb[0].mxu0
        %v1020 = vadd.f32 %v428, %v1019
        %v1021 = vpop.f32.mrb[0].mxu0
        %v1022 = vadd.f32 %v428, %v1021
        %1023 = vmatprep.mubr.f32.mxu0 0.0
        %1024 = vmatmul.mubr.f32.gmra.mrb[0].mxu0 %v736
        %v1025 = vpop.f32.mrb[0].mxu0
        %v1026 = vadd.f32 %v433, %v1025
        %v1027 = vpop.f32.mrb[0].mxu0
        %v1028 = vadd.f32 %v433, %v1027
        %1029 = vmatprep.mubr.f32.mxu0 0.0
        %1030 = vmatmul.mubr.f32.gmra.mrb[0].mxu0 %v739
        %v1031 = vpop.f32.mrb[0].mxu0
        %v1032 = vadd.f32 %v438, %v1031
        %v1033 = vpop.f32.mrb[0].mxu0
        %v1034 = vadd.f32 %v438, %v1033
        %1035 = vmatprep.mubr.f32.mxu0 0.0
        %1036 = vmatmul.mubr.f32.gmra.mrb[0].mxu0 %v742
        %v1037 = vpop.f32.mrb[0].mxu0
        %v1038 = vadd.f32 %v443, %v1037
        %v1039 = vpop.f32.mrb[0].mxu0
        %v1040 = vadd.f32 %v443, %v1039
        %1041 = vmatprep.mubr.f32.mxu0 0.0
        %1042 = vmatmul.mubr.f32.gmra.mrb[0].mxu0 %v745
        %v1043 = vpop.f32.mrb[0].mxu0
        %v1044 = vadd.f32 %v448, %v1043
        %v1045 = vpop.f32.mrb[0].mxu0
        %v1046 = vadd.f32 %v448, %v1045
        %1047 = vmatprep.mubr.f32.mxu0 0.0
        %1048 = vmatmul.mubr.f32.gmra.mrb[0].mxu0 %v748
        %v1049 = vpop.f32.mrb[0].mxu0
        %v1050 = vadd.f32 %v453, %v1049
        %v1051 = vpop.f32.mrb[0].mxu0
        %v1052 = vadd.f32 %v453, %v1051
        %1053 = vmatprep.mubr.f32.mxu0 0.0
        %1054 = vmatmul.mubr.f32.gmra.mrb[0].mxu0 %v751
        %v1055 = vpop.f32.mrb[0].mxu0
        %v1056 = vadd.f32 %v458, %v1055
        %v1057 = vpop.f32.mrb[0].mxu0
        %v1058 = vadd.f32 %v458, %v1057
        %1059 = vmatprep.mubr.f32.mxu0 0.0
        %1060 = vmatmul.mubr.f32.gmra.mrb[0].mxu0 %v754
        %v1061 = vpop.f32.mrb[0].mxu0
        %v1062 = vadd.f32 %v463, %v1061
        %v1063 = vpop.f32.mrb[0].mxu0
        %v1064 = vadd.f32 %v463, %v1063
        %1065 = vmatprep.mubr.f32.mxu0 0.0
        %1066 = vmatmul.mubr.f32.gmra.mrb[0].mxu0 %v757
        %v1067 = vpop.f32.mrb[0].mxu0
        %v1068 = vadd.f32 %v468, %v1067
        %v1069 = vpop.f32.mrb[0].mxu0
        %v1070 = vadd.f32 %v468, %v1069
        %1071 = vmatprep.mubr.f32.mxu0 0.0
        %1072 = vmatmul.mubr.f32.gmra.mrb[0].mxu0 %v760
        %v1073 = vpop.f32.mrb[0].mxu0
        %v1074 = vadd.f32 %v473, %v1073
        %v1075 = vpop.f32.mrb[0].mxu0
        %v1076 = vadd.f32 %v473, %v1075
        %1077 = vmatprep.mubr.f32.mxu0 0.0
        %1078 = vmatmul.mubr.f32.gmra.mrb[0].mxu0 %v763
        %v1079 = vpop.f32.mrb[0].mxu0
        %v1080 = vadd.f32 %v478, %v1079
        %v1081 = vpop.f32.mrb[0].mxu0
        %v1082 = vadd.f32 %v478, %v1081
        %1083 = vmatprep.mubr.f32.mxu0 0.0
        %1084 = vmatmul.mubr.f32.gmra.mrb[0].mxu0 %v766
        %v1085 = vpop.f32.mrb[0].mxu0
        %v1086 = vadd.f32 %v483, %v1085
        %v1087 = vpop.f32.mrb[0].mxu0
        %v1088 = vadd.f32 %v483, %v1087
        %1089 = vmatprep.mubr.f32.mxu0 0.0
        %1090 = vmatmul.mubr.f32.gmra.mrb[0].mxu0 %v769
        %v1091 = vpop.f32.mrb[0].mxu0
        %v1092 = vadd.f32 %v488, %v1091
        %v1093 = vpop.f32.mrb[0].mxu0
        %v1094 = vadd.f32 %v488, %v1093
        %1095 = vmatprep.mubr.f32.mxu0 0.0
        %1096 = vmatmul.mubr.f32.gmra.mrb[0].mxu0 %v772
        %v1097 = vpop.f32.mrb[0].mxu0
        %v1098 = vadd.f32 %v493, %v1097
        %v1099 = vpop.f32.mrb[0].mxu0
        %v1100 = vadd.f32 %v493, %v1099
        %1101 = vmatprep.mubr.f32.mxu0 0.0
        %1102 = vmatmul.mubr.f32.gmra.mrb[0].mxu0 %v775
        %v1103 = vpop.f32.mrb[0].mxu0
        %v1104 = vadd.f32 %v498, %v1103
        %v1105 = vpop.f32.mrb[0].mxu0
        %v1106 = vadd.f32 %v498, %v1105
        %1107 = vmatprep.mubr.f32.mxu0 0.0
        %1108 = vmatmul.mubr.f32.gmra.mrb[0].mxu0 %v778
        %v1109 = vpop.f32.mrb[0].mxu0
        %v1110 = vadd.f32 %v503, %v1109
        %v1111 = vpop.f32.mrb[0].mxu0
        %v1112 = vadd.f32 %v503, %v1111
        %1113 = vmatprep.mubr.f32.mxu0 0.0
        %1114 = vmatmul.mubr.f32.gmra.mrb[0].mxu0 %v781
        %v1115 = vpop.f32.mrb[0].mxu0
        %v1116 = vadd.f32 %v508, %v1115
        %v1117 = vpop.f32.mrb[0].mxu0
        %v1118 = vadd.f32 %v508, %v1117
        %1119 = vmatprep.mubr.f32.mxu0 0.0
        %1120 = vmatmul.mubr.f32.gmra.mrb[0].mxu0 %v784
        %v1121 = vpop.f32.mrb[0].mxu0
        %v1122 = vadd.f32 %v513, %v1121
        %v1123 = vpop.f32.mrb[0].mxu0
        %v1124 = vadd.f32 %v513, %v1123
        %1125 = vmatprep.mubr.f32.mxu0 0.0
        %1126 = vmatmul.mubr.f32.gmra.mrb[0].mxu0 %v787
        %v1127 = vpop.f32.mrb[0].mxu0
        %v1128 = vadd.f32 %v518, %v1127
        %v1129 = vpop.f32.mrb[0].mxu0
        %v1130 = vadd.f32 %v518, %v1129
        %1131 = vmatprep.mubr.f32.mxu0 0.0
        %1132 = vmatmul.mubr.f32.gmra.mrb[0].mxu0 %v790
        %v1133 = vpop.f32.mrb[0].mxu0
        %v1134 = vadd.f32 %v523, %v1133
        %v1135 = vpop.f32.mrb[0].mxu0
        %v1136 = vadd.f32 %v523, %v1135
        %1137 = vmatprep.mubr.f32.mxu0 0.0
        %1138 = vmatmul.mubr.f32.gmra.mrb[0].mxu0 %v793
        %v1139 = vpop.f32.mrb[0].mxu0
        %v1140 = vadd.f32 %v528, %v1139
        %v1141 = vpop.f32.mrb[0].mxu0
        %v1142 = vadd.f32 %v528, %v1141
        %1143 = vmatprep.mubr.f32.mxu0 0.0
        %1144 = vmatmul.mubr.f32.gmra.mrb[0].mxu0 %v796
        %v1145 = vpop.f32.mrb[0].mxu0
        %v1146 = vadd.f32 %v533, %v1145
        %v1147 = vpop.f32.mrb[0].mxu0
        %v1148 = vadd.f32 %v533, %v1147
        %1149 = vmatprep.mubr.f32.mxu0 0.0
        %1150 = vmatmul.mubr.f32.gmra.mrb[0].mxu0 %v799
        %v1151 = vpop.f32.mrb[0].mxu0
        %v1152 = vadd.f32 %v538, %v1151
        %v1153 = vpop.f32.mrb[0].mxu0
        %v1154 = vadd.f32 %v538, %v1153
        %1155 = vmatprep.mubr.f32.mxu0 0.0
        %1156 = vmatmul.mubr.f32.gmra.mrb[0].mxu0 %v802
        %v1157 = vpop.f32.mrb[0].mxu0
        %v1158 = vadd.f32 %v543, %v1157
        %v1159 = vpop.f32.mrb[0].mxu0
        %v1160 = vadd.f32 %v543, %v1159
        %1161 = vmatprep.mubr.f32.mxu0 0.0
        %1162 = vmatmul.mubr.f32.gmra.mrb[0].mxu0 %v805
        %v1163 = vpop.f32.mrb[0].mxu0
        %v1164 = vadd.f32 %v548, %v1163
        %v1165 = vpop.f32.mrb[0].mxu0
        %v1166 = vadd.f32 %v548, %v1165
        %1167 = vmatprep.mubr.f32.mxu0 0.0
        %1168 = vmatmul.mubr.f32.gmra.mrb[0].mxu0 %v808
        %v1169 = vpop.f32.mrb[0].mxu0
        %v1170 = vadd.f32 %v553, %v1169
        %v1171 = vpop.f32.mrb[0].mxu0
        %v1172 = vadd.f32 %v553, %v1171
        %1173 = vmatprep.mubr.f32.mxu0 0.0
        %1174 = vmatmul.mubr.f32.gmra.mrb[0].mxu0 %v811
        %v1175 = vpop.f32.mrb[0].mxu0
        %v1176 = vadd.f32 %v558, %v1175
        %v1177 = vpop.f32.mrb[0].mxu0
        %v1178 = vadd.f32 %v558, %v1177
        %1179 = vmatprep.mubr.f32.mxu0 0.0
        %1180 = vmatmul.mubr.f32.gmra.mrb[0].mxu0 %v814
        %v1181 = vpop.f32.mrb[0].mxu0
        %v1182 = vadd.f32 %v563, %v1181
        %v1183 = vpop.f32.mrb[0].mxu0
        %v1184 = vadd.f32 %v563, %v1183
        %1185 = vmatprep.mubr.f32.mxu0 0.0
        %1186 = vmatmul.mubr.f32.gmra.mrb[0].mxu0 %v817
        %v1187 = vpop.f32.mrb[0].mxu0
        %v1188 = vadd.f32 %v568, %v1187
        %v1189 = vpop.f32.mrb[0].mxu0
        %v1190 = vadd.f32 %v568, %v1189
        %1191 = vmatprep.mubr.f32.mxu0 0.0
        %1192 = vmatmul.mubr.f32.gmra.mrb[0].mxu0 %v820
        %v1193 = vpop.f32.mrb[0].mxu0
        %v1194 = vadd.f32 %v573, %v1193
        %v1195 = vpop.f32.mrb[0].mxu0
        %v1196 = vadd.f32 %v573, %v1195
        %1197 = vmatprep.mubr.f32.mxu0 0.0
        %1198 = vmatmul.mubr.f32.gmra.mrb[0].mxu0 %v823
        %v1199 = vpop.f32.mrb[0].mxu0
        %v1200 = vadd.f32 %v578, %v1199
        %v1201 = vpop.f32.mrb[0].mxu0
        %v1202 = vadd.f32 %v578, %v1201
        %1203 = vmatprep.mubr.f32.mxu0 0.0
        %1204 = vmatmul.mubr.f32.gmra.mrb[0].mxu0 %v826
        %v1205 = vpop.f32.mrb[0].mxu0
        %v1206 = vadd.f32 %v583, %v1205
        %v1207 = vpop.f32.mrb[0].mxu0
        %v1208 = vadd.f32 %v583, %v1207
        %1209 = vmatprep.mubr.f32.mxu0 0.0
        %1210 = vmatmul.mubr.f32.gmra.mrb[0].mxu0 %v829
        %v1211 = vpop.f32.mrb[0].mxu0
        %v1212 = vadd.f32 %v588, %v1211
        %v1213 = vpop.f32.mrb[0].mxu0
        %v1214 = vadd.f32 %v588, %v1213
        %1215 = vmatprep.mubr.f32.mxu0 0.0
        %1216 = vmatmul.mubr.f32.gmra.mrb[0].mxu0 %v832
        %v1217 = vpop.f32.mrb[0].mxu0
        %v1218 = vadd.f32 %v593, %v1217
        %v1219 = vpop.f32.mrb[0].mxu0
        %v1220 = vadd.f32 %v593, %v1219
        %1221 = vmatprep.mubr.f32.mxu0 0.0
        %1222 = vmatmul.mubr.f32.gmra.mrb[0].mxu0 %v835
        %v1223 = vpop.f32.mrb[0].mxu0
        %v1224 = vadd.f32 %v598, %v1223
        %v1225 = vpop.f32.mrb[0].mxu0
        %v1226 = vadd.f32 %v598, %v1225
        %1227 = vmatprep.mubr.f32.mxu0 0.0
        %1228 = vmatmul.mubr.f32.gmra.mrb[0].mxu0 %v838
        %v1229 = vpop.f32.mrb[0].mxu0
        %v1230 = vadd.f32 %v603, %v1229
        %v1231 = vpop.f32.mrb[0].mxu0
        %v1232 = vadd.f32 %v603, %v1231
        %1233 = vmatprep.mubr.f32.mxu0 0.0
        %1234 = vmatmul.mubr.f32.gmra.mrb[0].mxu0 %v841
        %v1235 = vpop.f32.mrb[0].mxu0
        %v1236 = vadd.f32 %v608, %v1235
        %v1237 = vpop.f32.mrb[0].mxu0
        %v1238 = vadd.f32 %v608, %v1237
        %1239 = vmatprep.mubr.f32.mxu0 0.0
        %1240 = vmatmul.mubr.f32.gmra.mrb[0].mxu0 %v844
        %v1241 = vpop.f32.mrb[0].mxu0
        %v1242 = vadd.f32 %v613, %v1241
        %v1243 = vpop.f32.mrb[0].mxu0
        %v1244 = vadd.f32 %v613, %v1243
        %1245 = vmatprep.mubr.f32.mxu0 0.0
        %1246 = vmatmul.mubr.f32.gmra.mrb[0].mxu0 %v847
        %v1247 = vpop.f32.mrb[0].mxu0
        %v1248 = vadd.f32 %v618, %v1247
        %v1249 = vpop.f32.mrb[0].mxu0
        %v1250 = vadd.f32 %v618, %v1249
        %1251 = vmatprep.mubr.f32.mxu0 0.0
        %1252 = vmatmul.mubr.f32.gmra.mrb[0].mxu0 %v850
        %v1253 = vpop.f32.mrb[0].mxu0
        %v1254 = vadd.f32 %v623, %v1253
        %v1255 = vpop.f32.mrb[0].mxu0
        %v1256 = vadd.f32 %v623, %v1255
        %1257 = vmatprep.mubr.f32.mxu0 0.0
        %1258 = vmatmul.mubr.f32.gmra.mrb[0].mxu0 %v853
        %v1259 = vpop.f32.mrb[0].mxu0
        %v1260 = vadd.f32 %v628, %v1259
        %v1261 = vpop.f32.mrb[0].mxu0
        %v1262 = vadd.f32 %v628, %v1261
        %1263 = vmatprep.mubr.f32.mxu0 0.0
        %1264 = vmatmul.mubr.f32.gmra.mrb[0].mxu0 %v856
        %v1265 = vpop.f32.mrb[0].mxu0
        %v1266 = vadd.f32 %v633, %v1265
        %v1267 = vpop.f32.mrb[0].mxu0
        %v1268 = vadd.f32 %v633, %v1267
        %1269 = vmatprep.mubr.f32.mxu0 0.0
        %1270 = vmatmul.mubr.f32.gmra.mrb[0].mxu0 %v859
        %v1271 = vpop.f32.mrb[0].mxu0
        %v1272 = vadd.f32 %v638, %v1271
        %v1273 = vpop.f32.mrb[0].mxu0
        %v1274 = vadd.f32 %v638, %v1273
        %1275 = vmatprep.mubr.f32.mxu0 0.0
        %1276 = vmatmul.mubr.f32.gmra.mrb[0].mxu0 %v862
        %v1277 = vpop.f32.mrb[0].mxu0
        %v1278 = vadd.f32 %v643, %v1277
        %v1279 = vpop.f32.mrb[0].mxu0
        %v1280 = vadd.f32 %v643, %v1279
        %1281 = vmatprep.mubr.f32.mxu0 0.0
        %1282 = vmatmul.mubr.f32.gmra.mrb[0].mxu0 %v865
        %v1283 = vpop.f32.mrb[0].mxu0
        %v1284 = vadd.f32 %v648, %v1283
        %v1285 = vpop.f32.mrb[0].mxu0
        %v1286 = vadd.f32 %v648, %v1285
        %1287 = vmatprep.mubr.f32.mxu0 0.0
        %1288 = vmatmul.mubr.f32.gmra.mrb[0].mxu0 %v868
        %v1289 = vpop.f32.mrb[0].mxu0
        %v1290 = vadd.f32 %v653, %v1289
        %v1291 = vpop.f32.mrb[0].mxu0
        %v1292 = vadd.f32 %v653, %v1291
        %1293 = vmatprep.mubr.f32.mxu0 0.0
        %1294 = vmatmul.mubr.f32.gmra.mrb[0].mxu0 %v871
        %v1295 = vpop.f32.mrb[0].mxu0
        %v1296 = vadd.f32 %v658, %v1295
        %v1297 = vpop.f32.mrb[0].mxu0
        %v1298 = vadd.f32 %v658, %v1297
        %1299 = vmatprep.mubr.f32.mxu0 0.0
        %1300 = vmatmul.mubr.f32.gmra.mrb[0].mxu0 %v874
        %v1301 = vpop.f32.mrb[0].mxu0
        %v1302 = vadd.f32 %v663, %v1301
        %v1303 = vpop.f32.mrb[0].mxu0
        %v1304 = vadd.f32 %v663, %v1303
        %1305 = vmatprep.mubr.f32.mxu0 0.0
        %1306 = vmatmul.mubr.f32.gmra.mrb[0].mxu0 %v877
        %v1307 = vpop.f32.mrb[0].mxu0
        %v1308 = vadd.f32 %v668, %v1307
        %v1309 = vpop.f32.mrb[0].mxu0
        %v1310 = vadd.f32 %v668, %v1309
        %1311 = vmatprep.mubr.f32.mxu0 0.0
        %1312 = vmatmul.mubr.f32.gmra.mrb[0].mxu0 %v880
        %v1313 = vpop.f32.mrb[0].mxu0
        %v1314 = vadd.f32 %v673, %v1313
        %v1315 = vpop.f32.mrb[0].mxu0
        %v1316 = vadd.f32 %v673, %v1315
        %1317 = vmatprep.mubr.f32.mxu0 0.0
        %1318 = vmatmul.mubr.f32.gmra.mrb[0].mxu0 %v883
        %v1319 = vpop.f32.mrb[0].mxu0
        %v1320 = vadd.f32 %v678, %v1319
        %v1321 = vpop.f32.mrb[0].mxu0
        %v1322 = vadd.f32 %v678, %v1321
        %1323 = vmatprep.mubr.f32.mxu0 0.0
        %1324 = vmatmul.mubr.f32.gmra.mrb[0].mxu0 %v886
        %v1325 = vpop.f32.mrb[0].mxu0
        %v1326 = vadd.f32 %v683, %v1325
        %v1327 = vpop.f32.mrb[0].mxu0
        %v1328 = vadd.f32 %v683, %v1327
        %1329 = vmatprep.mubr.f32.mxu0 0.0
        %1330 = vmatmul.mubr.f32.gmra.mrb[0].mxu0 %v889
        %v1331 = vpop.f32.mrb[0].mxu0
        %v1332 = vadd.f32 %v688, %v1331
        %v1333 = vpop.f32.mrb[0].mxu0
        %v1334 = vadd.f32 %v688, %v1333
        %1335 = vmatprep.mubr.f32.mxu0 0.0
        %1336 = vmatmul.mubr.f32.gmra.mrb[0].mxu0 %v892
        %v1337 = vpop.f32.mrb[0].mxu0
        %v1338 = vadd.f32 %v693, %v1337
        %v1339 = vpop.f32.mrb[0].mxu0
        %v1340 = vadd.f32 %v693, %v1339
        %1341 = vmatprep.mubr.f32.mxu0 0.0
        %1342 = vmatmul.mubr.f32.gmra.mrb[0].mxu0 %v895
        %v1343 = vpop.f32.mrb[0].mxu0
        %v1344 = vadd.f32 %v698, %v1343
        %v1345 = vpop.f32.mrb[0].mxu0
        %v1346 = vadd.f32 %v698, %v1345
        %1347 = vmatprep.mubr.f32.mxu0 0.0
        %1348 = vmatmul.mubr.f32.gmra.mrb[0].mxu0 %v898
        %v1349 = vpop.f32.mrb[0].mxu0
        %v1350 = vadd.f32 %v703, %v1349
        %v1351 = vpop.f32.mrb[0].mxu0
        %v1352 = vadd.f32 %v703, %v1351
        %1353 = vdwg.mxu0
        %v1354 = vmax.f32 %v972, 0.0
        %v1355 = vmax.f32 %v974, 0.0
        %v1356 = vmax.f32 %v978, 0.0
        %v1357 = vmax.f32 %v980, 0.0
        %v1358 = vmax.f32 %v984, 0.0
        %v1359 = vmax.f32 %v986, 0.0
        %v1360 = vmax.f32 %v990, 0.0
        %v1361 = vmax.f32 %v992, 0.0
        %v1362 = vmax.f32 %v996, 0.0
        %v1363 = vmax.f32 %v998, 0.0
        %v1364 = vmax.f32 %v1002, 0.0
        %v1365 = vmax.f32 %v1004, 0.0
        %v1366 = vmax.f32 %v1008, 0.0
        %v1367 = vmax.f32 %v1010, 0.0
        %v1368 = vmax.f32 %v1014, 0.0
        %v1369 = vmax.f32 %v1016, 0.0
        %v1370 = vmax.f32 %v1020, 0.0
        %v1371 = vmax.f32 %v1022, 0.0
        %v1372 = vmax.f32 %v1026, 0.0
        %v1373 = vmax.f32 %v1028, 0.0
        %v1374 = vmax.f32 %v1032, 0.0
        %v1375 = vmax.f32 %v1034, 0.0
        %v1376 = vmax.f32 %v1038, 0.0
        %v1377 = vmax.f32 %v1040, 0.0
        %v1378 = vmax.f32 %v1044, 0.0
        %v1379 = vmax.f32 %v1046, 0.0
        %v1380 = vmax.f32 %v1050, 0.0
        %v1381 = vmax.f32 %v1052, 0.0
        %v1382 = vmax.f32 %v1056, 0.0
        %v1383 = vmax.f32 %v1058, 0.0
        %v1384 = vmax.f32 %v1062, 0.0
        %v1385 = vmax.f32 %v1064, 0.0
        %v1386 = vmax.f32 %v1068, 0.0
        %v1387 = vmax.f32 %v1070, 0.0
        %v1388 = vmax.f32 %v1074, 0.0
        %v1389 = vmax.f32 %v1076, 0.0
        %v1390 = vmax.f32 %v1080, 0.0
        %v1391 = vmax.f32 %v1082, 0.0
        %v1392 = vmax.f32 %v1086, 0.0
        %v1393 = vmax.f32 %v1088, 0.0
        %v1394 = vmax.f32 %v1092, 0.0
        %v1395 = vmax.f32 %v1094, 0.0
        %v1396 = vmax.f32 %v1098, 0.0
        %v1397 = vmax.f32 %v1100, 0.0
        %v1398 = vmax.f32 %v1104, 0.0
        %v1399 = vmax.f32 %v1106, 0.0
        %v1400 = vmax.f32 %v1110, 0.0
        %v1401 = vmax.f32 %v1112, 0.0
        %v1402 = vmax.f32 %v1116, 0.0
        %v1403 = vmax.f32 %v1118, 0.0
        %v1404 = vmax.f32 %v1122, 0.0
        %v1405 = vmax.f32 %v1124, 0.0
        %v1406 = vmax.f32 %v1128, 0.0
        %v1407 = vmax.f32 %v1130, 0.0
        %v1408 = vmax.f32 %v1134, 0.0
        %v1409 = vmax.f32 %v1136, 0.0
        %v1410 = vmax.f32 %v1140, 0.0
        %v1411 = vmax.f32 %v1142, 0.0
        %v1412 = vmax.f32 %v1146, 0.0
        %v1413 = vmax.f32 %v1148, 0.0
        %v1414 = vmax.f32 %v1152, 0.0
        %v1415 = vmax.f32 %v1154, 0.0
        %v1416 = vmax.f32 %v1158, 0.0
        %v1417 = vmax.f32 %v1160, 0.0
        %v1418 = vmax.f32 %v1164, 0.0
        %v1419 = vmax.f32 %v1166, 0.0
        %v1420 = vmax.f32 %v1170, 0.0
        %v1421 = vmax.f32 %v1172, 0.0
        %v1422 = vmax.f32 %v1176, 0.0
        %v1423 = vmax.f32 %v1178, 0.0
        %v1424 = vmax.f32 %v1182, 0.0
        %v1425 = vmax.f32 %v1184, 0.0
        %v1426 = vmax.f32 %v1188, 0.0
        %v1427 = vmax.f32 %v1190, 0.0
        %v1428 = vmax.f32 %v1194, 0.0
        %v1429 = vmax.f32 %v1196, 0.0
        %v1430 = vmax.f32 %v1200, 0.0
        %v1431 = vmax.f32 %v1202, 0.0
        %v1432 = vmax.f32 %v1206, 0.0
        %v1433 = vmax.f32 %v1208, 0.0
        %v1434 = vmax.f32 %v1212, 0.0
        %v1435 = vmax.f32 %v1214, 0.0
        %v1436 = vmax.f32 %v1218, 0.0
        %v1437 = vmax.f32 %v1220, 0.0
        %v1438 = vmax.f32 %v1224, 0.0
        %v1439 = vmax.f32 %v1226, 0.0
        %v1440 = vmax.f32 %v1230, 0.0
        %v1441 = vmax.f32 %v1232, 0.0
        %v1442 = vmax.f32 %v1236, 0.0
        %v1443 = vmax.f32 %v1238, 0.0
        %v1444 = vmax.f32 %v1242, 0.0
        %v1445 = vmax.f32 %v1244, 0.0
        %v1446 = vmax.f32 %v1248, 0.0
        %v1447 = vmax.f32 %v1250, 0.0
        %v1448 = vmax.f32 %v1254, 0.0
        %v1449 = vmax.f32 %v1256, 0.0
        %v1450 = vmax.f32 %v1260, 0.0
        %v1451 = vmax.f32 %v1262, 0.0
        %v1452 = vmax.f32 %v1266, 0.0
        %v1453 = vmax.f32 %v1268, 0.0
        %v1454 = vmax.f32 %v1272, 0.0
        %v1455 = vmax.f32 %v1274, 0.0
        %v1456 = vmax.f32 %v1278, 0.0
        %v1457 = vmax.f32 %v1280, 0.0
        %v1458 = vmax.f32 %v1284, 0.0
        %v1459 = vmax.f32 %v1286, 0.0
        %v1460 = vmax.f32 %v1290, 0.0
        %v1461 = vmax.f32 %v1292, 0.0
        %v1462 = vmax.f32 %v1296, 0.0
        %v1463 = vmax.f32 %v1298, 0.0
        %v1464 = vmax.f32 %v1302, 0.0
        %v1465 = vmax.f32 %v1304, 0.0
        %v1466 = vmax.f32 %v1308, 0.0
        %v1467 = vmax.f32 %v1310, 0.0
        %v1468 = vmax.f32 %v1314, 0.0
        %v1469 = vmax.f32 %v1316, 0.0
        %v1470 = vmax.f32 %v1320, 0.0
        %v1471 = vmax.f32 %v1322, 0.0
        %v1472 = vmax.f32 %v1326, 0.0
        %v1473 = vmax.f32 %v1328, 0.0
        %v1474 = vmax.f32 %v1332, 0.0
        %v1475 = vmax.f32 %v1334, 0.0
        %v1476 = vmax.f32 %v1338, 0.0
        %v1477 = vmax.f32 %v1340, 0.0
        %v1478 = vmax.f32 %v1344, 0.0
        %v1479 = vmax.f32 %v1346, 0.0
        %v1480 = vmax.f32 %v1350, 0.0
        %v1481 = vmax.f32 %v1352, 0.0
        %v1482 = vld [vmem:[%s3] sm:$0xf]
        %v1483 = vld [vmem:[#allocation2] sm:$0x1]
        %1485 = vset.pattern.permute.xlu0 0
        %1486 = vperm.xlu0 %1485, %v1483
        %v1487 = vpop.permute.xlu0 %1486
        %v1489 = vlaneseq
        %v1490 = vshrl.u32 %v1489, 7
        %v1491 = vsub.s32 0, %v1490
        %v1492 = vrot.slane %v1487, %v1491
        %v1494 = vlaneseq
        %v1495 = vshrl.u32 %v1494, 7
        %v1496 = vsub.s32 0, %v1495
        %v1497 = vrot.slane %v1482, %v1496
        %v1498 = vlaneseq
        %v1499 = vshrl.u32 %v1498, 7
        %v1500 = vsub.s32 1, %v1499
        %v1501 = vrot.slane %v1482, %v1500
        %v1502 = vlaneseq
        %v1503 = vshrl.u32 %v1502, 7
        %v1504 = vsub.s32 2, %v1503
        %v1505 = vrot.slane %v1482, %v1504
        %v1506 = vlaneseq
        %v1507 = vshrl.u32 %v1506, 7
        %v1508 = vsub.s32 3, %v1507
        %v1509 = vrot.slane %v1482, %v1508
        %1514 = vmatprep.subr.mxu0 %v1355
        %1515 = vmatpush1.msra.mxu0 %v1354
        %1516 = vmatprep.subr.mxu0 %v1357
        %1517 = vmatpush1.msra.mxu0 %v1356
        %1518 = vmatprep.subr.mxu0 %v1359
        %1519 = vmatpush1.msra.mxu0 %v1358
        %1520 = vmatprep.subr.mxu0 %v1361
        %1521 = vmatpush1.msra.mxu0 %v1360
        %1522 = vmatprep.subr.mxu0 %v1363
        %1523 = vmatpush1.msra.mxu0 %v1362
        %1524 = vmatprep.subr.mxu0 %v1365
        %1525 = vmatpush1.msra.mxu0 %v1364
        %1526 = vmatprep.subr.mxu0 %v1367
        %1527 = vmatpush1.msra.mxu0 %v1366
        %1528 = vmatprep.subr.mxu0 %v1369
        %1529 = vmatpush1.msra.mxu0 %v1368
        %1530 = vmatprep.subr.mxu0 %v1371
        %1531 = vmatpush1.msra.mxu0 %v1370
        %1532 = vmatprep.subr.mxu0 %v1373
        %1533 = vmatpush1.msra.mxu0 %v1372
        %1534 = vmatprep.subr.mxu0 %v1375
        %1535 = vmatpush1.msra.mxu0 %v1374
        %1536 = vmatprep.subr.mxu0 %v1377
        %1537 = vmatpush1.msra.mxu0 %v1376
        %1538 = vmatprep.subr.mxu0 %v1379
        %1539 = vmatpush1.msra.mxu0 %v1378
        %1540 = vmatprep.subr.mxu0 %v1381
        %1541 = vmatpush1.msra.mxu0 %v1380
        %1542 = vmatprep.subr.mxu0 %v1383
        %1543 = vmatpush1.msra.mxu0 %v1382
        %1544 = vmatprep.subr.mxu0 %v1385
        %1545 = vmatpush1.msra.mxu0 %v1384
        %1546 = vmatprep.subr.mxu0 %v1387
        %1547 = vmatpush1.msra.mxu0 %v1386
        %1548 = vmatprep.subr.mxu0 %v1389
        %1549 = vmatpush1.msra.mxu0 %v1388
        %1550 = vmatprep.subr.mxu0 %v1391
        %1551 = vmatpush1.msra.mxu0 %v1390
        %1552 = vmatprep.subr.mxu0 %v1393
        %1553 = vmatpush1.msra.mxu0 %v1392
        %1554 = vmatprep.subr.mxu0 %v1395
        %1555 = vmatpush1.msra.mxu0 %v1394
        %1556 = vmatprep.subr.mxu0 %v1397
        %1557 = vmatpush1.msra.mxu0 %v1396
        %1558 = vmatprep.subr.mxu0 %v1399
        %1559 = vmatpush1.msra.mxu0 %v1398
        %1560 = vmatprep.subr.mxu0 %v1401
        %1561 = vmatpush1.msra.mxu0 %v1400
        %1562 = vmatprep.subr.mxu0 %v1403
        %1563 = vmatpush1.msra.mxu0 %v1402
        %1564 = vmatprep.subr.mxu0 %v1405
        %1565 = vmatpush1.msra.mxu0 %v1404
        %1566 = vmatprep.subr.mxu0 %v1407
        %1567 = vmatpush1.msra.mxu0 %v1406
        %1568 = vmatprep.subr.mxu0 %v1409
        %1569 = vmatpush1.msra.mxu0 %v1408
        %1570 = vmatprep.subr.mxu0 %v1411
        %1571 = vmatpush1.msra.mxu0 %v1410
        %1572 = vmatprep.subr.mxu0 %v1413
        %1573 = vmatpush1.msra.mxu0 %v1412
        %1574 = vmatprep.subr.mxu0 %v1415
        %1575 = vmatpush1.msra.mxu0 %v1414
        %1576 = vmatprep.subr.mxu0 %v1417
        %1577 = vmatpush1.msra.mxu0 %v1416
        %1578 = vmatprep.mubr.f32.mxu0 %v1501
        %1579 = vmatmul.mubr.f32.gmra.mrb[0].mxu0 %v1497
        %v1580 = vpop.f32.mrb[0].mxu0
        %v1581 = vadd.f32 %v1492, %v1580
        %v1582 = vpop.f32.mrb[0].mxu0
        %v1583 = vadd.f32 %v1492, %v1582
        %1584 = vdwg.mxu0
        %1585 = vmatprep.subr.mxu0 %v1419
        %1586 = vmatpush1.msra.mxu0 %v1418
        %1587 = vmatprep.subr.mxu0 %v1421
        %1588 = vmatpush1.msra.mxu0 %v1420
        %1589 = vmatprep.subr.mxu0 %v1423
        %1590 = vmatpush1.msra.mxu0 %v1422
        %1591 = vmatprep.subr.mxu0 %v1425
        %1592 = vmatpush1.msra.mxu0 %v1424
        %1593 = vmatprep.subr.mxu0 %v1427
        %1594 = vmatpush1.msra.mxu0 %v1426
        %1595 = vmatprep.subr.mxu0 %v1429
        %1596 = vmatpush1.msra.mxu0 %v1428
        %1597 = vmatprep.subr.mxu0 %v1431
        %1598 = vmatpush1.msra.mxu0 %v1430
        %1599 = vmatprep.subr.mxu0 %v1433
        %1600 = vmatpush1.msra.mxu0 %v1432
        %1601 = vmatprep.subr.mxu0 %v1435
        %1602 = vmatpush1.msra.mxu0 %v1434
        %1603 = vmatprep.subr.mxu0 %v1437
        %1604 = vmatpush1.msra.mxu0 %v1436
        %1605 = vmatprep.subr.mxu0 %v1439
        %1606 = vmatpush1.msra.mxu0 %v1438
        %1607 = vmatprep.subr.mxu0 %v1441
        %1608 = vmatpush1.msra.mxu0 %v1440
        %1609 = vmatprep.subr.mxu0 %v1443
        %1610 = vmatpush1.msra.mxu0 %v1442
        %1611 = vmatprep.subr.mxu0 %v1445
        %1612 = vmatpush1.msra.mxu0 %v1444
        %1613 = vmatprep.subr.mxu0 %v1447
        %1614 = vmatpush1.msra.mxu0 %v1446
        %1615 = vmatprep.subr.mxu0 %v1449
        %1616 = vmatpush1.msra.mxu0 %v1448
        %1617 = vmatprep.subr.mxu0 %v1451
        %1618 = vmatpush1.msra.mxu0 %v1450
        %1619 = vmatprep.subr.mxu0 %v1453
        %1620 = vmatpush1.msra.mxu0 %v1452
        %1621 = vmatprep.subr.mxu0 %v1455
        %1622 = vmatpush1.msra.mxu0 %v1454
        %1623 = vmatprep.subr.mxu0 %v1457
        %1624 = vmatpush1.msra.mxu0 %v1456
        %1625 = vmatprep.subr.mxu0 %v1459
        %1626 = vmatpush1.msra.mxu0 %v1458
        %1627 = vmatprep.subr.mxu0 %v1461
        %1628 = vmatpush1.msra.mxu0 %v1460
        %1629 = vmatprep.subr.mxu0 %v1463
        %1630 = vmatpush1.msra.mxu0 %v1462
        %1631 = vmatprep.subr.mxu0 %v1465
        %1632 = vmatpush1.msra.mxu0 %v1464
        %1633 = vmatprep.subr.mxu0 %v1467
        %1634 = vmatpush1.msra.mxu0 %v1466
        %1635 = vmatprep.subr.mxu0 %v1469
        %1636 = vmatpush1.msra.mxu0 %v1468
        %1637 = vmatprep.subr.mxu0 %v1471
        %1638 = vmatpush1.msra.mxu0 %v1470
        %1639 = vmatprep.subr.mxu0 %v1473
        %1640 = vmatpush1.msra.mxu0 %v1472
        %1641 = vmatprep.subr.mxu0 %v1475
        %1642 = vmatpush1.msra.mxu0 %v1474
        %1643 = vmatprep.subr.mxu0 %v1477
        %1644 = vmatpush1.msra.mxu0 %v1476
        %1645 = vmatprep.subr.mxu0 %v1479
        %1646 = vmatpush1.msra.mxu0 %v1478
        %1647 = vmatprep.subr.mxu0 %v1481
        %1648 = vmatpush1.msra.mxu0 %v1480
        %1649 = vmatprep.mubr.f32.mxu0 %v1509
        %1650 = vmatmul.mubr.f32.gmra.mrb[0].mxu0 %v1505
        %v1651 = vpop.f32.mrb[0].mxu0
        %v1652 = vadd.f32 %v1581, %v1651
        %v1653 = vpop.f32.mrb[0].mxu0
        %v1654 = vadd.f32 %v1583, %v1653
        %1655 = vdwg.mxu0
        %vm1656 = vcmp.gt.f32.partialorder %v1652, 20.0
        %vm1657 = vcmp.gt.f32.partialorder %v1654, 20.0
        %v1658 = vmin.f32 %v1652, 20.0
        %v1659 = vmin.f32 %v1654, 20.0
        %v1660 = vmul.f32 %v1658, 1.442695
        %v1661 = vpow.pop %v1660
        %v1662 = vmul.f32 %v1659, 1.442695
        %v1663 = vpow.pop %v1662
        %v1664 = vadd.f32 %v1661, 1.0
        %v1665 = vlog2.pop %v1664
        %v1666 = vmul.f32 %v1665, 0.6931472
        %v1667 = vmul.f32 -0.5, %v1661
        %v1668 = vadd.f32 %v1667, 1.0
        %v1669 = vmul.f32 %v1668, %v1661
        %v1670 = vand.u32 2147483647, %v1661
        %vm1671 = vcmp.lt.f32.partialorder %v1670, 0.0004427343
        %v1672 = vsel %vm1671, %v1669, %v1666
        %v1673 = vadd.f32 %v1663, 1.0
        %v1674 = vlog2.pop %v1673
        %v1675 = vmul.f32 %v1674, 0.6931472
        %v1676 = vmul.f32 -0.5, %v1663
        %v1677 = vadd.f32 %v1676, 1.0
        %v1678 = vmul.f32 %v1677, %v1663
        %v1679 = vand.u32 2147483647, %v1663
        %vm1680 = vcmp.lt.f32.partialorder %v1679, 0.0004427343
        %v1681 = vsel %vm1680, %v1678, %v1675
        %v1682 = vsel %vm1656, %v1652, %v1672
        %v1683 = vsel %vm1657, %v1654, %v1681
        %v1686 = vcombine.low %v1682, %v1683
        %v1688 = vunpack.c.l.s4 1966171168
        %v1689 = vunpack.c.0.s8 %v1688
        %v1690 = vlaneseq
        %v1691 = vshrl.u32 %v1690, 7
        %v1692 = vsub.s32 %v1689, %v1691
        %v1693 = vrot.slane %v1686, %v1692
        %v1695 = vunpack.c.l.s4 1966171168
        %v1696 = vunpack.c.0.s8 %v1695
        %v1697 = vlaneseq
        %v1698 = vshrl.u32 %v1697, 7
        %v1699 = vsub.s32 %v1696, %v1698
        %v1700 = vrot.slane %v1693, %v1699
        %v1702 = vlaneseq
        %vm1703 = vcmp.ge.s32.totalorder %v1702, 0
        %vm1704 = vcmp.lt.s32.totalorder %v1702, 256
        %vm1705 = vmand %vm1703, %vm1704
        %1706 = vst.msk [vmem:[%s244] sm:$0x3] %vm1705, %v1700
        %s1707 = sand.u32 %s155, 1
        %s1708 = scalar_lea.sflag [#allocation4], %s1707
        %s1709 = sand.u32 %s155, 1
        %s1710 = smul.addr %s1709, 2
        %s1711 = scalar_lea.vmem [#allocation3], %s1710
        // Predicated region
        $region41: #{tpu_custom_call.1} parent=39 // pred_check
          %p1712 = pneg %p165
        $region42: #{tpu_custom_call.1} parent=39 // pred_check_branch
          %1714 = sbr.rel (%p1712) target = $region44
        $region43: #{tpu_custom_call.1} parent=39 // pred_region
          %s1715 = smul.u32 2, %s26
          %s1717 = ssub.s32 32, 32
          %1718 = vsyncadd %s1708, %s1717
          %s1719 = smul.addr %s25, 2
          %s1720 = sadd.s32 %s1715, %s1719
          %s1721 = smul.addr %s1720, 16
          %s1722 = scalar_lea.hbm %s5, %s1721
          %s1724 = sshll.u32 %s1711, 4
          %s1725 = int_to_ptr.vmem [resolvable:$true] %s1724
          %1727 = dma.vmem_to_hbm [thread:$0]  %s1725, 32, %s1722, %s1708
        $region44: #{tpu_custom_call.1} parent=39 // pred_fallthru
          _
      $region40: #{tpu_custom_call.1} parent=5 // pred_fallthru
        _
      %p1728 = scmp.le.s32.totalorder 2, %s16
      // Predicated region
      $region45: #{tpu_custom_call.1} parent=5 // pred_check
        %p1729 = pneg %p1728
      $region46: #{tpu_custom_call.1} parent=5 // pred_check_branch
        %1731 = sbr.rel (%p1729) target = $region48
      $region47: #{tpu_custom_call.1} parent=5 // pred_region
        %s1732 = ssub.s32 %s16, 2
        // Predicated region
        $region49: #{tpu_custom_call.1} parent=47 // pred_check
          %p1733 = pneg %p171
        $region50: #{tpu_custom_call.1} parent=47 // pred_check_branch
          %1735 = sbr.rel (%p1733) target = $region52
        $region51: #{tpu_custom_call.1} parent=47 // pred_region
          %s1736 = sand.u32 %s156, 1
          %s1737 = scalar_lea.sflag [#allocation4], %s1736
          %s1738 = sand.u32 %s156, 1
          %s1739 = smul.addr %s1738, 2
          %s1740 = scalar_lea.vmem [#allocation3], %s1739
          %1741 = dma.done %s1737, 32
        $region52: #{tpu_custom_call.1} parent=47 // pred_fallthru
          _
      $region48: #{tpu_custom_call.1} parent=5 // pred_fallthru
        _
    $region6: #{tpu_custom_call.1} parent=1 // loop_footer
      %s20 = sadd.s32 1, %s16
    $region7: #{tpu_custom_call.1} parent=1 // loop_footer_branch
      %15 = sbr.rel target = $region3
    $region8: #{tpu_custom_call.1} parent=1 // loop_exit
      _
    %1742 = vsyncpa [#allocation4], 1
    %s1743 = scalar_lea.sflag [#allocation4], 1
    %1744 = vsyncpa %s1743, 1

</llo_original>
